<compile_context>
chip_gen: v5e
topology: v5e:2x2
jax: 0.10.0
libtpu: 0.0.40
codegen_flags: <defaults>
</compile_context>

<pallas_src>
import jax
import jax.numpy as jnp
from jax import lax
from jax.experimental import pallas as pl
from jax.experimental.pallas import tpu as pltpu


def _const_spec(shape):
    nd = len(shape)
    return pl.BlockSpec(tuple(shape), lambda g, _z=(0,) * nd: _z)


# --------------------------------------------------------------------------
# Fused CTRGC kernel: one grid step = `nb` samples, all lane-dense.
# --------------------------------------------------------------------------
def _ctrgc_kernel(x_ref, w3b_ref, b3_ref, w12b_ref, b12_ref, w4b_ref,
                  bias_ref, mask_ref, o_ref):
    nb, T, CV = x_ref.shape
    CoV = w3b_ref.shape[1]
    R, Co, V = w4b_ref.shape[0], w4b_ref.shape[1], w4b_ref.shape[2]
    cdt = x_ref.dtype

    x_blk = x_ref[...]                                        # (nb, T, C*V)

    # conv3: ONE lane-dense MXU matmul (M = nb*T, K = C*V, N = Co*V); the 1x1
    # conv was folded into kron(w3^T, I_V) so x never leaves its layout.
    x3 = (jnp.dot(x_blk.reshape(nb * T, CV), w3b_ref[...],
                  preferred_element_type=jnp.float32)
          + b3_ref[...])                                      # (nb*T, Co*V) f32

    # Attention branch (tiny; f32 VPU/EUP math even when the MXU runs bf16).
    xm = jnp.mean(x_blk.astype(jnp.float32), axis=1)          # (nb, C*V) mean over T
    x12 = (jnp.dot(xm, w12b_ref[...],
                   preferred_element_type=jnp.float32)
           + b12_ref[...])                                    # (nb, 2R*V) conv1|conv2 fused

    # a1t[n, o, v, u] = alpha*conv4(tanh(x1_u - x2_v))[o] + alpha*b4[o] + A[u, v]
    # conv4 has K = rel_channels (tiny) -> R unrolled VPU FMAs, no MXU push.
    a1t = jnp.broadcast_to(bias_ref[...][None], (nb, Co, V, V))   # bias/A/alpha folded
    for r in range(R):
        x1r = x12[:, r * V:(r + 1) * V]                       # (nb, V)  indexed by u
        x2r = x12[:, (R + r) * V:(R + r + 1) * V]             # (nb, V)  indexed by v
        m_r = jnp.tanh(x1r[:, None, :] - x2r[:, :, None])     # (nb, V, U) f32
        a1t = a1t + w4b_ref[r] * m_r[:, None, :, :]           # (nb, Co, V, U)

    # einsum('nouv,notv->notu') as per-sample lane-dense block-diag matmuls:
    # B[n, o*V+v, o*U+u] = a1t[n, o, v, u]; off-diagonal blocks masked to 0.
    a1t2 = a1t.reshape(nb, Co * V, V)                         # (nb, Co*V, U)
    big = jnp.concatenate([a1t2] * Co, axis=2)                # (nb, Co*V, Co*U)
    B = (big * mask_ref[...][None]).astype(cdt)

    x3_3d = x3.reshape(nb, T, CoV).astype(cdt)
    out = lax.dot_general(x3_3d, B,
                          dimension_numbers=(((2,), (1,)), ((0,), (0,))),
                          preferred_element_type=jnp.float32)  # (nb, T, Co*U)
    o_ref[...] = out.astype(o_ref.dtype)


# --------------------------------------------------------------------------
# Batch-block size: amortize step cost, budget against v7x VMEM, keep >= 2
# grid steps so both v7x TensorCores are used.
# --------------------------------------------------------------------------
def _pick_nb(N, T, CV, CoV, itemsize):
    if N <= 1:
        return 1
    per_sample = (2 * T * CV * itemsize            # double-buffered input block
                  + 2 * T * CoV * 4                # double-buffered output block
                  + 2 * T * CoV * (4 + itemsize)   # x3 accum + cast copy
                  + 3 * CoV * CoV * 4)             # B / tiled / masked intermediates
    budget = 6 * 1024 * 1024                       # conservative slice of v7x scoped VMEM
    cap = max(1, budget // per_sample)
    return int(max(1, min(cap, N // 2)))


# --------------------------------------------------------------------------
# Wrapper: layout plumbing + exact parameter folding only.
# --------------------------------------------------------------------------
def ctrgc_pallas(x, w1, b1, w2, b2, w3, b3, w4, b4, A=None, alpha=1.0,
                 compute_dtype=jnp.float32, out_dtype=jnp.float32, nb=None):
    N, C, T, V = x.shape
    R = w1.shape[0]
    Co = w3.shape[0]
    CV, CoV = C * V, Co * V
    f32 = jnp.float32

    if A is None:
        A = jnp.zeros((V, V), f32)
    alpha = jnp.asarray(alpha, f32)
    w1, w2, w3, w4 = (a.astype(f32) for a in (w1, w2, w3, w4))
    b1, b2, b3, b4 = (a.astype(f32) for a in (b1, b2, b3, b4))
    A = A.astype(f32)

    # ---- fold the 1x1 convs into lane-dense constant operands (exact) ----
    # NOTE: under jit with constant weights these fold at compile time; in a
    # training loop hoist them out of the step function.
    eye_v = jnp.eye(V, dtype=f32)
    w3big = jnp.kron(w3.T, eye_v).astype(compute_dtype)               # (C*V, Co*V)
    b3big = jnp.repeat(b3, V)[None, :]                                # (1, Co*V)
    w12 = jnp.concatenate([w1, w2], axis=0)                           # conv1|conv2 fused
    w12big = jnp.kron(w12.T, eye_v)                                   # (C*V, 2R*V)
    b12big = jnp.repeat(jnp.concatenate([b1, b2]), V)[None, :]        # (1, 2R*V)
    w4blk = jnp.broadcast_to((alpha * w4).T[:, :, None, None],
                             (R, Co, V, V))                           # alpha folded
    bias_blk = (alpha * b4)[:, None, None] + A.T[None, :, :]          # (Co, V, V)
    blockmask = jnp.kron(jnp.eye(Co, dtype=f32), jnp.ones((V, V), f32))  # (CoV, CoV)

    # ---- lane-dense activation layout (wrapper-side plumbing only) ----
    x_tl = jnp.transpose(x, (0, 2, 1, 3)).reshape(N, T, CV).astype(compute_dtype)

    if nb is None:
        nb = _pick_nb(N, T, CV, CoV, jnp.dtype(compute_dtype).itemsize)
    n_pad = pl.cdiv(N, nb) * nb
    if n_pad != N:
        x_tl = jnp.pad(x_tl, ((0, n_pad - N), (0, 0), (0, 0)))

    args = (x_tl, w3big, b3big, w12big, b12big, w4blk, bias_blk, blockmask)
    in_specs = [pl.BlockSpec((nb, T, CV), lambda g: (g, 0, 0))]
    # Constant operands: constant index_map -> fetched once and stay resident.
    # (pipeline_mode=pl.Buffered(1) could reclaim their second buffer if VMEM
    #  ever got tight; unnecessary at these sizes.)
    in_specs += [_const_spec(a.shape) for a in args[1:]]

    out_tl = pl.pallas_call(
        _ctrgc_kernel,
        out_shape=jax.ShapeDtypeStruct((n_pad, T, CoV), out_dtype),
        grid=(n_pad // nb,),
        in_specs=in_specs,
        out_specs=pl.BlockSpec((nb, T, CoV), lambda g: (g, 0, 0)),
        compiler_params=pltpu.CompilerParams(
            dimension_semantics=("parallel",)),     # v7x: sample blocks per TC
    )(*args)

    out = out_tl[:N].reshape(N, T, Co, V)           # lane-dense -> (N, Co, T, U)
    return jnp.transpose(out, (0, 2, 1, 3))


# --------------------------------------------------------------------------
# Pure-JAX reference mirroring the PyTorch graph (for validation).
# --------------------------------------------------------------------------
def ctrgc_ref(x, w1, b1, w2, b2, w3, b3, w4, b4, A, alpha):
    def pw(h, w, b):                                # 1x1 Conv2d
        return jnp.einsum('oc,nctv->notv', w, h) + b[None, :, None, None]

    x1 = pw(x, w1, b1).mean(axis=2)                 # (N, R, V)
    x2 = pw(x, w2, b2).mean(axis=2)                 # (N, R, V)
    x3 = pw(x, w3, b3)                              # (N, Co, T, V)
    m = jnp.tanh(x1[:, :, :, None] - x2[:, :, None, :])                # (N, R, U, V)
    a1 = jnp.einsum('or,nruv->nouv', w4, m) + b4[None, :, None, None]  # (N, Co, U, V)
    a1 = a1 * alpha + A[None, None]
    return jnp.einsum('nouv,notv->notu', a1, x3)    # (N, Co, T, U)


# --------------------------------------------------------------------------
if __name__ == "__main__":
    # Module-consistent small shapes: in_channels=out_channels=16 (not 3/9),
    # so rel_channels = 16 // 8 = 2; C*V = Co*V = 128 (one full lane tile).
    N, C, T, V = 2, 16, 16, 8
    Co, R = C, C // 8

    key = jax.random.PRNGKey(0)
    ks = jax.random.split(key, 10)

    def rnd(k, shape, scale):
        return (scale * jax.random.normal(k, shape)).astype(jnp.float32)

    x = rnd(ks[0], (N, C, T, V), 1.0)
    w1 = rnd(ks[1], (R, C), 0.30); b1 = rnd(ks[2], (R,), 0.05)    # conv1
    w2 = rnd(ks[3], (R, C), 0.30); b2 = rnd(ks[4], (R,), 0.05)    # conv2
    w3 = rnd(ks[5], (Co, C), 0.15); b3 = rnd(ks[6], (Co,), 0.05)  # conv3
    w4 = rnd(ks[7], (Co, R), 0.30); b4 = rnd(ks[8], (Co,), 0.05)  # conv4
    A = rnd(ks[9], (V, V), 0.30)                                  # adjacency
    alpha = 0.7

    ref = ctrgc_ref(x, w1, b1, w2, b2, w3, b3, w4, b4, A, alpha)

    # f32 path (strict check).
    out = jax.block_until_ready(
        ctrgc_pallas(x, w1, b1, w2, b2, w3, b3, w4, b4, A=A, alpha=alpha))
    assert out.shape == (N, Co, T, V), out.shape
    max_diff = float(jnp.max(jnp.abs(out - ref)))
    if not jnp.allclose(out, ref, atol=1e-3, rtol=1e-3):
        raise AssertionError(f"f32 Pallas/reference mismatch, max abs diff = {max_diff}")

    # bf16 MXU-operand path (halves HBM traffic; f32 accumulation) -- loose check.
    out16 = jax.block_until_ready(
        ctrgc_pallas(x, w1, b1, w2, b2, w3, b3, w4, b4, A=A, alpha=alpha,
                     compute_dtype=jnp.bfloat16))
    max_diff16 = float(jnp.max(jnp.abs(out16 - ref)))
    if not jnp.allclose(out16, ref, atol=1.5e-1, rtol=5e-2):
        raise AssertionError(f"bf16 Pallas/reference mismatch, max abs diff = {max_diff16}")

    print("KERNEL_OK")
</pallas_src>

<mosaic_0001>
module attributes {stable_mosaic.version = 11 : i64} {
  func.func @_ctrgc_kernel(%arg0: i32, %arg1: memref<1x16x128xf32, #tpu.memory_space<vmem>>, %arg2: memref<128x128xf32, #tpu.memory_space<vmem>>, %arg3: memref<1x128xf32, #tpu.memory_space<vmem>>, %arg4: memref<128x32xf32, #tpu.memory_space<vmem>>, %arg5: memref<1x32xf32, #tpu.memory_space<vmem>>, %arg6: memref<2x16x8x8xf32, #tpu.memory_space<vmem>>, %arg7: memref<16x8x8xf32, #tpu.memory_space<vmem>>, %arg8: memref<128x128xf32, #tpu.memory_space<vmem>>, %arg9: memref<1x16x128xf32, #tpu.memory_space<vmem>>) attributes {dimension_semantics = [#tpu.dimension_semantics<parallel>], iteration_bounds = array<i64: 2>, scalar_prefetch = 0 : i64, scratch_operands = 0 : i64, tpu.core_type = #tpu.core_type<tc>, window_params = [{transform_indices = @transform_0, window_bounds = array<i64: 1, 16, 128>}, {pipeline_mode = #tpu.pipeline_mode<synchronous>, transform_indices = @transform_1, window_bounds = array<i64: 128, 128>}, {pipeline_mode = #tpu.pipeline_mode<synchronous>, transform_indices = @transform_2, window_bounds = array<i64: 1, 128>}, {pipeline_mode = #tpu.pipeline_mode<synchronous>, transform_indices = @transform_3, window_bounds = array<i64: 128, 32>}, {pipeline_mode = #tpu.pipeline_mode<synchronous>, transform_indices = @transform_4, window_bounds = array<i64: 1, 32>}, {pipeline_mode = #tpu.pipeline_mode<synchronous>, transform_indices = @transform_5, window_bounds = array<i64: 2, 16, 8, 8>}, {pipeline_mode = #tpu.pipeline_mode<synchronous>, transform_indices = @transform_6, window_bounds = array<i64: 16, 8, 8>}, {pipeline_mode = #tpu.pipeline_mode<synchronous>, transform_indices = @transform_7, window_bounds = array<i64: 128, 128>}, {transform_indices = @transform_8, window_bounds = array<i64: 1, 16, 128>}]} {
    %c0 = arith.constant 0 : index
    %c0_0 = arith.constant 0 : index
    %c0_1 = arith.constant 0 : index
    %0 = vector.load %arg1[%c0, %c0_0, %c0_1] : memref<1x16x128xf32, #tpu.memory_space<vmem>>, vector<1x16x128xf32>
    %1 = vector.shape_cast %0 : vector<1x16x128xf32> to vector<16x128xf32>
    %c0_2 = arith.constant 0 : index
    %c0_3 = arith.constant 0 : index
    %2 = vector.load %arg2[%c0_2, %c0_3] : memref<128x128xf32, #tpu.memory_space<vmem>>, vector<128x128xf32>
    %cst = arith.constant dense<0.000000e+00> : vector<16x128xf32>
    %3 = tpu.matmul %1, %2, %cst {dimension_numbers = #tpu.dot_dimension_numbers<[1], [0], [0], [1], [0, 0, 1, 1], [], []>} : vector<16x128xf32>, vector<128x128xf32>, vector<16x128xf32> -> vector<16x128xf32>
    %c0_4 = arith.constant 0 : index
    %c0_5 = arith.constant 0 : index
    %4 = vector.load %arg3[%c0_4, %c0_5] : memref<1x128xf32, #tpu.memory_space<vmem>>, vector<1x128xf32>
    %5 = vector.broadcast %4 : vector<1x128xf32> to vector<16x128xf32>
    %6 = arith.addf %3, %5 : vector<16x128xf32>
    %cst_6 = arith.constant dense<0.000000e+00> : vector<1x128xf32>
    %7 = vector.multi_reduction <add>, %0, %cst_6 [1] : vector<1x16x128xf32> to vector<1x128xf32>
    %cst_7 = arith.constant 1.600000e+01 : f32
    %8 = vector.broadcast %cst_7 : f32 to vector<1x128xf32>
    %9 = arith.divf %7, %8 : vector<1x128xf32>
    %c0_8 = arith.constant 0 : index
    %c0_9 = arith.constant 0 : index
    %10 = vector.load %arg4[%c0_8, %c0_9] : memref<128x32xf32, #tpu.memory_space<vmem>>, vector<128x32xf32>
    %cst_10 = arith.constant dense<0.000000e+00> : vector<1x32xf32>
    %11 = tpu.matmul %9, %10, %cst_10 {dimension_numbers = #tpu.dot_dimension_numbers<[1], [0], [0], [1], [0, 0, 1, 1], [], []>} : vector<1x128xf32>, vector<128x32xf32>, vector<1x32xf32> -> vector<1x32xf32>
    %c0_11 = arith.constant 0 : index
    %c0_12 = arith.constant 0 : index
    %12 = vector.load %arg5[%c0_11, %c0_12] : memref<1x32xf32, #tpu.memory_space<vmem>>, vector<1x32xf32>
    %13 = arith.addf %11, %12 : vector<1x32xf32>
    %c0_13 = arith.constant 0 : index
    %c0_14 = arith.constant 0 : index
    %c0_15 = arith.constant 0 : index
    %14 = vector.load %arg7[%c0_13, %c0_14, %c0_15] : memref<16x8x8xf32, #tpu.memory_space<vmem>>, vector<16x8x8xf32>
    %15 = vector.shape_cast %14 : vector<16x8x8xf32> to vector<1x16x8x8xf32>
    %16 = vector.extract_strided_slice %13 {offsets = [0, 0], sizes = [1, 8], strides = [1, 1]} : vector<1x32xf32> to vector<1x8xf32>
    %17 = vector.extract_strided_slice %13 {offsets = [0, 16], sizes = [1, 8], strides = [1, 1]} : vector<1x32xf32> to vector<1x8xf32>
    %18 = vector.shape_cast %16 : vector<1x8xf32> to vector<1x1x8xf32>
    %19 = vector.shape_cast %17 : vector<1x8xf32> to vector<1x8x1xf32>
    %20 = vector.broadcast %18 : vector<1x1x8xf32> to vector<1x8x8xf32>
    %21 = vector.broadcast %19 : vector<1x8x1xf32> to vector<1x8x8xf32>
    %22 = arith.subf %20, %21 : vector<1x8x8xf32>
    %23 = math.tanh %22 : vector<1x8x8xf32>
    %c0_16 = arith.constant 0 : index
    %c0_17 = arith.constant 0 : index
    %c0_18 = arith.constant 0 : index
    %c0_19 = arith.constant 0 : index
    %24 = vector.load %arg6[%c0_16, %c0_17, %c0_18, %c0_19] : memref<2x16x8x8xf32, #tpu.memory_space<vmem>>, vector<1x16x8x8xf32>
    %25 = vector.shape_cast %24 : vector<1x16x8x8xf32> to vector<16x8x8xf32>
    %26 = vector.shape_cast %23 : vector<1x8x8xf32> to vector<1x1x8x8xf32>
    %27 = vector.shape_cast %25 : vector<16x8x8xf32> to vector<1x16x8x8xf32>
    %28 = vector.broadcast %26 : vector<1x1x8x8xf32> to vector<1x16x8x8xf32>
    %29 = arith.mulf %27, %28 : vector<1x16x8x8xf32>
    %30 = arith.addf %15, %29 : vector<1x16x8x8xf32>
    %31 = vector.extract_strided_slice %13 {offsets = [0, 8], sizes = [1, 8], strides = [1, 1]} : vector<1x32xf32> to vector<1x8xf32>
    %32 = vector.extract_strided_slice %13 {offsets = [0, 24], sizes = [1, 8], strides = [1, 1]} : vector<1x32xf32> to vector<1x8xf32>
    %33 = vector.shape_cast %31 : vector<1x8xf32> to vector<1x1x8xf32>
    %34 = vector.shape_cast %32 : vector<1x8xf32> to vector<1x8x1xf32>
    %35 = vector.broadcast %33 : vector<1x1x8xf32> to vector<1x8x8xf32>
    %36 = vector.broadcast %34 : vector<1x8x1xf32> to vector<1x8x8xf32>
    %37 = arith.subf %35, %36 : vector<1x8x8xf32>
    %38 = math.tanh %37 : vector<1x8x8xf32>
    %c1 = arith.constant 1 : index
    %c0_20 = arith.constant 0 : index
    %c0_21 = arith.constant 0 : index
    %c0_22 = arith.constant 0 : index
    %39 = vector.load %arg6[%c1, %c0_20, %c0_21, %c0_22] : memref<2x16x8x8xf32, #tpu.memory_space<vmem>>, vector<1x16x8x8xf32>
    %40 = vector.shape_cast %39 : vector<1x16x8x8xf32> to vector<16x8x8xf32>
    %41 = vector.shape_cast %38 : vector<1x8x8xf32> to vector<1x1x8x8xf32>
    %42 = vector.shape_cast %40 : vector<16x8x8xf32> to vector<1x16x8x8xf32>
    %43 = vector.broadcast %41 : vector<1x1x8x8xf32> to vector<1x16x8x8xf32>
    %44 = arith.mulf %42, %43 : vector<1x16x8x8xf32>
    %45 = arith.addf %30, %44 : vector<1x16x8x8xf32>
    %46 = vector.shape_cast %45 : vector<1x16x8x8xf32> to vector<1x128x8xf32>
    %47 = tpu.concatenate %46, %46, %46, %46, %46, %46, %46, %46, %46, %46, %46, %46, %46, %46, %46, %46 in 2 : vector<1x128x8xf32>, vector<1x128x8xf32>, vector<1x128x8xf32>, vector<1x128x8xf32>, vector<1x128x8xf32>, vector<1x128x8xf32>, vector<1x128x8xf32>, vector<1x128x8xf32>, vector<1x128x8xf32>, vector<1x128x8xf32>, vector<1x128x8xf32>, vector<1x128x8xf32>, vector<1x128x8xf32>, vector<1x128x8xf32>, vector<1x128x8xf32>, vector<1x128x8xf32> -> vector<1x128x128xf32>
    %c0_23 = arith.constant 0 : index
    %c0_24 = arith.constant 0 : index
    %48 = vector.load %arg8[%c0_23, %c0_24] : memref<128x128xf32, #tpu.memory_space<vmem>>, vector<128x128xf32>
    %49 = vector.shape_cast %48 : vector<128x128xf32> to vector<1x128x128xf32>
    %50 = arith.mulf %47, %49 : vector<1x128x128xf32>
    %51 = vector.shape_cast %6 : vector<16x128xf32> to vector<1x16x128xf32>
    %cst_25 = arith.constant dense<0.000000e+00> : vector<1x16x128xf32>
    %52 = tpu.matmul %51, %50, %cst_25 {dimension_numbers = #tpu.dot_dimension_numbers<[2], [1], [1], [2], [0, 0, 0, 1, 1, 2], [0], [0]>} : vector<1x16x128xf32>, vector<1x128x128xf32>, vector<1x16x128xf32> -> vector<1x16x128xf32>
    %c0_26 = arith.constant 0 : index
    %c0_27 = arith.constant 0 : index
    %c0_28 = arith.constant 0 : index
    %53 = vector.load %arg9[%c0_26, %c0_27, %c0_28] : memref<1x16x128xf32, #tpu.memory_space<vmem>>, vector<1x16x128xf32>
    tpu.vector_store %arg9[%c0_26, %c0_27, %c0_28], %52 {strides = array<i32>} : memref<1x16x128xf32, #tpu.memory_space<vmem>>, vector<1x16x128xf32>,
    return
  }
  func.func @transform_0(%arg0: i32) -> (i32, i32, i32) {
    %c0_i32 = arith.constant 0 : i32
    %c0_i32_0 = arith.constant 0 : i32
    %c0_i32_1 = arith.constant 0 : i32
    return %arg0, %c0_i32, %c0_i32_0 : i32, i32, i32
  }
  func.func @transform_1(%arg0: i32) -> (i32, i32) {
    %c0_i32 = arith.constant 0 : i32
    %c0_i32_0 = arith.constant 0 : i32
    %c0_i32_1 = arith.constant 0 : i32
    return %c0_i32, %c0_i32_0 : i32, i32
  }
  func.func @transform_2(%arg0: i32) -> (i32, i32) {
    %c0_i32 = arith.constant 0 : i32
    %c0_i32_0 = arith.constant 0 : i32
    %c0_i32_1 = arith.constant 0 : i32
    return %c0_i32, %c0_i32_0 : i32, i32
  }
  func.func @transform_3(%arg0: i32) -> (i32, i32) {
    %c0_i32 = arith.constant 0 : i32
    %c0_i32_0 = arith.constant 0 : i32
    %c0_i32_1 = arith.constant 0 : i32
    return %c0_i32, %c0_i32_0 : i32, i32
  }
  func.func @transform_4(%arg0: i32) -> (i32, i32) {
    %c0_i32 = arith.constant 0 : i32
    %c0_i32_0 = arith.constant 0 : i32
    %c0_i32_1 = arith.constant 0 : i32
    return %c0_i32, %c0_i32_0 : i32, i32
  }
  func.func @transform_5(%arg0: i32) -> (i32, i32, i32, i32) {
    %c0_i32 = arith.constant 0 : i32
    %c0_i32_0 = arith.constant 0 : i32
    %c0_i32_1 = arith.constant 0 : i32
    %c0_i32_2 = arith.constant 0 : i32
    %c0_i32_3 = arith.constant 0 : i32
    return %c0_i32, %c0_i32_0, %c0_i32_1, %c0_i32_2 : i32, i32, i32, i32
  }
  func.func @transform_6(%arg0: i32) -> (i32, i32, i32) {
    %c0_i32 = arith.constant 0 : i32
    %c0_i32_0 = arith.constant 0 : i32
    %c0_i32_1 = arith.constant 0 : i32
    %c0_i32_2 = arith.constant 0 : i32
    return %c0_i32, %c0_i32_0, %c0_i32_1 : i32, i32, i32
  }
  func.func @transform_7(%arg0: i32) -> (i32, i32) {
    %c0_i32 = arith.constant 0 : i32
    %c0_i32_0 = arith.constant 0 : i32
    %c0_i32_1 = arith.constant 0 : i32
    return %c0_i32, %c0_i32_0 : i32, i32
  }
  func.func @transform_8(%arg0: i32) -> (i32, i32, i32) {
    %c0_i32 = arith.constant 0 : i32
    %c0_i32_0 = arith.constant 0 : i32
    %c0_i32_1 = arith.constant 0 : i32
    return %arg0, %c0_i32, %c0_i32_0 : i32, i32, i32
  }
}

</mosaic_0001>

<llo_original>
// kernel: tpu_custom_call.1
$region0: #{tpu_custom_call.1}
  #allocation0 [shape = 'u32[]', space=smem, size = 0x4, offset = 0x4, fixed_abs, tag = 'smem constant byte address 0x4 - core index']
  #allocation1 [shape = 'u32[72,128]{1,0:T(1,128)}', space=vmem, size = 0x9000, scoped, tag = 'internal scratch']
  %s0 = inlined_call_operand.vmem [shape: f32[2,16,128], index: 0, kind: input, shape index: {}]
  %s1 = inlined_call_operand.vmem [shape: f32[128,128], index: 1, kind: input, shape index: {}]
  %s2 = inlined_call_operand.vmem [shape: f32[1,128], index: 2, kind: input, shape index: {}]
  %s3 = inlined_call_operand.vmem [shape: f32[128,32], index: 3, kind: input, shape index: {}]
  %s4 = inlined_call_operand.vmem [shape: f32[1,32], index: 4, kind: input, shape index: {}]
  %s5 = inlined_call_operand.vmem [shape: f32[2,16,8,8], index: 5, kind: input, shape index: {}]
  %s6 = inlined_call_operand.vmem [shape: f32[16,8,8], index: 6, kind: input, shape index: {}]
  %s7 = inlined_call_operand.vmem [shape: f32[128,128], index: 7, kind: input, shape index: {}]
  %s8 = inlined_call_operand.hbm [shape: f32[2,16,128], index: 8, kind: output, shape index: {}]
  %s9 = sld [smem:[#allocation0]]
  $region65: #{tpu_custom_call.1} parent=0
    _
  %s11 = ssub.s32 1, %s9
  %s12 = scalar_select 0, %s11, %s9
  $region1: #{tpu_custom_call.1} parent=0
    #allocation2 [shape = 'u8[16384]{0}', space=vmem, size = 0x4000, scoped, tag = 'output window, operand 0']
    #allocation3 [shape = 's32[2]{0}', space=sflag, size = 0x8, scoped, tag = 'scoped memory for tpu_custom_call.1']
    %13 = vsyncpa [#allocation3], 0
    %s14 = scalar_lea.sflag [#allocation3], 1
    %15 = vsyncpa %s14, 0
    loop: start=0, step=1, limit=4
    $region2: #{tpu_custom_call.1} parent=1 // loop_pre_header
      _
    $region3: #{tpu_custom_call.1} parent=1 // loop_header
      %s17 = sphi 0, %s21
      %p18 = scmp.ge.s32.totalorder %s17, 4
      %s27 = sphi 0, %s29
      %s30 = sphi 0, %s27
      %s31 = sphi 0, %s30
      %s47 = sphi 0, %s31
      %s51 = sphi 0, %s51
      %s53 = sphi 0, %s51
      %s54 = sphi 0, %s53
      %s68 = sphi 0, %s54
      %s72 = sphi 0, %s72
      %s74 = sphi 0, %s72
      %s75 = sphi 0, %s74
      %s89 = sphi 0, %s75
      %s93 = sphi 0, %s93
      %s95 = sphi 0, %s93
      %s96 = sphi 0, %s95
      %s110 = sphi 0, %s96
      %s114 = sphi 0, %s114
      %s116 = sphi 0, %s114
      %s117 = sphi 0, %s116
      %s131 = sphi 0, %s117
      %s135 = sphi 0, %s135
      %s137 = sphi 0, %s135
      %s138 = sphi 0, %s137
      %s152 = sphi 0, %s138
      %s156 = sphi 0, %s156
      %s158 = sphi 0, %s156
      %s159 = sphi 0, %s158
      %s173 = sphi 0, %s159
      %s177 = sphi 0, %s177
      %s179 = sphi 0, %s177
      %s180 = sphi 0, %s179
      %s194 = sphi 0, %s180
      %s200 = sphi 0, %s202
      %s203 = sphi 0, %s200
      %s204 = sphi 0, %s203
      %s220 = sphi 0, %s204
    $region4: #{tpu_custom_call.1} parent=1 // loop_header_branch
      %20 = sbr.rel (%p18) target = $region8
    $region5: #{tpu_custom_call.1} parent=1 // loop_body
      %s22 = ssub.s32 %s17, 1
      %s23 = ssub.s32 %s17, 2
      %s24 = sadd.s32 %s17, 1
      %s25 = ssub.s32 %s17, %s24
      %p26 = scmp.eq.s32.totalorder %s25, 0
      %s28 = sadd.s32 %s27, 1
      %s29 = scalar_select %p26, %s27, %s28
      %p32 = pneg %p26
      %p33 = scmp.eq.s32.totalorder %s17, 1
      %p34 = por %p32, %p33
      %p35 = scmp.ne.s32.totalorder %s27, %s30
      %p36 = scmp.eq.s32.totalorder %s17, 0
      %p37 = por %p35, %p36
      %p38 = scmp.ne.s32.totalorder %s27, %s30
      %p39 = scmp.eq.s32.totalorder %s22, 1
      %p40 = por %p38, %p39
      %p41 = scmp.ne.s32.totalorder %s30, %s31
      %p42 = scmp.eq.s32.totalorder %s22, 0
      %p43 = por %p41, %p42
      %p44 = scmp.ne.s32.totalorder %s30, %s31
      %p45 = scmp.eq.s32.totalorder %s23, 1
      %p46 = por %p44, %p45
      %p48 = scmp.ne.s32.totalorder %s31, %s47
      %p49 = scmp.eq.s32.totalorder %s23, 0
      %p50 = por %p48, %p49
      %s52 = sadd.s32 %s51, 1
      %p55 = scmp.eq.s32.totalorder %s17, 1
      %p56 = scmp.ne.s32.totalorder %s51, %s53
      %p57 = scmp.eq.s32.totalorder %s17, 0
      %p58 = por %p56, %p57
      %p59 = scmp.ne.s32.totalorder %s51, %s53
      %p60 = scmp.eq.s32.totalorder %s22, 1
      %p61 = por %p59, %p60
      %p62 = scmp.ne.s32.totalorder %s53, %s54
      %p63 = scmp.eq.s32.totalorder %s22, 0
      %p64 = por %p62, %p63
      %p65 = scmp.ne.s32.totalorder %s53, %s54
      %p66 = scmp.eq.s32.totalorder %s23, 1
      %p67 = por %p65, %p66
      %p69 = scmp.ne.s32.totalorder %s54, %s68
      %p70 = scmp.eq.s32.totalorder %s23, 0
      %p71 = por %p69, %p70
      %s73 = sadd.s32 %s72, 1
      %p76 = scmp.eq.s32.totalorder %s17, 1
      %p77 = scmp.ne.s32.totalorder %s72, %s74
      %p78 = scmp.eq.s32.totalorder %s17, 0
      %p79 = por %p77, %p78
      %p80 = scmp.ne.s32.totalorder %s72, %s74
      %p81 = scmp.eq.s32.totalorder %s22, 1
      %p82 = por %p80, %p81
      %p83 = scmp.ne.s32.totalorder %s74, %s75
      %p84 = scmp.eq.s32.totalorder %s22, 0
      %p85 = por %p83, %p84
      %p86 = scmp.ne.s32.totalorder %s74, %s75
      %p87 = scmp.eq.s32.totalorder %s23, 1
      %p88 = por %p86, %p87
      %p90 = scmp.ne.s32.totalorder %s75, %s89
      %p91 = scmp.eq.s32.totalorder %s23, 0
      %p92 = por %p90, %p91
      %s94 = sadd.s32 %s93, 1
      %p97 = scmp.eq.s32.totalorder %s17, 1
      %p98 = scmp.ne.s32.totalorder %s93, %s95
      %p99 = scmp.eq.s32.totalorder %s17, 0
      %p100 = por %p98, %p99
      %p101 = scmp.ne.s32.totalorder %s93, %s95
      %p102 = scmp.eq.s32.totalorder %s22, 1
      %p103 = por %p101, %p102
      %p104 = scmp.ne.s32.totalorder %s95, %s96
      %p105 = scmp.eq.s32.totalorder %s22, 0
      %p106 = por %p104, %p105
      %p107 = scmp.ne.s32.totalorder %s95, %s96
      %p108 = scmp.eq.s32.totalorder %s23, 1
      %p109 = por %p107, %p108
      %p111 = scmp.ne.s32.totalorder %s96, %s110
      %p112 = scmp.eq.s32.totalorder %s23, 0
      %p113 = por %p111, %p112
      %s115 = sadd.s32 %s114, 1
      %p118 = scmp.eq.s32.totalorder %s17, 1
      %p119 = scmp.ne.s32.totalorder %s114, %s116
      %p120 = scmp.eq.s32.totalorder %s17, 0
      %p121 = por %p119, %p120
      %p122 = scmp.ne.s32.totalorder %s114, %s116
      %p123 = scmp.eq.s32.totalorder %s22, 1
      %p124 = por %p122, %p123
      %p125 = scmp.ne.s32.totalorder %s116, %s117
      %p126 = scmp.eq.s32.totalorder %s22, 0
      %p127 = por %p125, %p126
      %p128 = scmp.ne.s32.totalorder %s116, %s117
      %p129 = scmp.eq.s32.totalorder %s23, 1
      %p130 = por %p128, %p129
      %p132 = scmp.ne.s32.totalorder %s117, %s131
      %p133 = scmp.eq.s32.totalorder %s23, 0
      %p134 = por %p132, %p133
      %s136 = sadd.s32 %s135, 1
      %p139 = scmp.eq.s32.totalorder %s17, 1
      %p140 = scmp.ne.s32.totalorder %s135, %s137
      %p141 = scmp.eq.s32.totalorder %s17, 0
      %p142 = por %p140, %p141
      %p143 = scmp.ne.s32.totalorder %s135, %s137
      %p144 = scmp.eq.s32.totalorder %s22, 1
      %p145 = por %p143, %p144
      %p146 = scmp.ne.s32.totalorder %s137, %s138
      %p147 = scmp.eq.s32.totalorder %s22, 0
      %p148 = por %p146, %p147
      %p149 = scmp.ne.s32.totalorder %s137, %s138
      %p150 = scmp.eq.s32.totalorder %s23, 1
      %p151 = por %p149, %p150
      %p153 = scmp.ne.s32.totalorder %s138, %s152
      %p154 = scmp.eq.s32.totalorder %s23, 0
      %p155 = por %p153, %p154
      %s157 = sadd.s32 %s156, 1
      %p160 = scmp.eq.s32.totalorder %s17, 1
      %p161 = scmp.ne.s32.totalorder %s156, %s158
      %p162 = scmp.eq.s32.totalorder %s17, 0
      %p163 = por %p161, %p162
      %p164 = scmp.ne.s32.totalorder %s156, %s158
      %p165 = scmp.eq.s32.totalorder %s22, 1
      %p166 = por %p164, %p165
      %p167 = scmp.ne.s32.totalorder %s158, %s159
      %p168 = scmp.eq.s32.totalorder %s22, 0
      %p169 = por %p167, %p168
      %p170 = scmp.ne.s32.totalorder %s158, %s159
      %p171 = scmp.eq.s32.totalorder %s23, 1
      %p172 = por %p170, %p171
      %p174 = scmp.ne.s32.totalorder %s159, %s173
      %p175 = scmp.eq.s32.totalorder %s23, 0
      %p176 = por %p174, %p175
      %s178 = sadd.s32 %s177, 1
      %p181 = scmp.eq.s32.totalorder %s17, 1
      %p182 = scmp.ne.s32.totalorder %s177, %s179
      %p183 = scmp.eq.s32.totalorder %s17, 0
      %p184 = por %p182, %p183
      %p185 = scmp.ne.s32.totalorder %s177, %s179
      %p186 = scmp.eq.s32.totalorder %s22, 1
      %p187 = por %p185, %p186
      %p188 = scmp.ne.s32.totalorder %s179, %s180
      %p189 = scmp.eq.s32.totalorder %s22, 0
      %p190 = por %p188, %p189
      %p191 = scmp.ne.s32.totalorder %s179, %s180
      %p192 = scmp.eq.s32.totalorder %s23, 1
      %p193 = por %p191, %p192
      %p195 = scmp.ne.s32.totalorder %s180, %s194
      %p196 = scmp.eq.s32.totalorder %s23, 0
      %p197 = por %p195, %p196
      %s198 = ssub.s32 %s17, %s24
      %p199 = scmp.eq.s32.totalorder %s198, 0
      %s201 = sadd.s32 %s200, 1
      %s202 = scalar_select %p199, %s200, %s201
      %p205 = pneg %p199
      %p206 = scmp.eq.s32.totalorder %s17, 1
      %p207 = por %p205, %p206
      %p208 = scmp.ne.s32.totalorder %s200, %s203
      %p209 = scmp.eq.s32.totalorder %s17, 0
      %p210 = por %p208, %p209
      %p211 = scmp.ne.s32.totalorder %s200, %s203
      %p212 = scmp.eq.s32.totalorder %s22, 1
      %p213 = por %p211, %p212
      %p214 = scmp.ne.s32.totalorder %s203, %s204
      %p215 = scmp.eq.s32.totalorder %s22, 0
      %p216 = por %p214, %p215
      %p217 = scmp.ne.s32.totalorder %s203, %s204
      %p218 = scmp.eq.s32.totalorder %s23, 1
      %p219 = por %p217, %p218
      %p221 = scmp.ne.s32.totalorder %s204, %s220
      %p222 = scmp.eq.s32.totalorder %s23, 0
      %p223 = por %p221, %p222
      %p224 = scmp.le.s32.totalorder 1, %s17
      %p225 = scmp.lt.s32.totalorder %s17, 3
      %p226 = pnand %p224, %p225
      %p227 = pneg %p226
      // Predicated region
      $region9: #{tpu_custom_call.1} parent=5 // pred_check
        _
      $region10: #{tpu_custom_call.1} parent=5 // pred_check_branch
        %229 = sbr.rel (%p226) target = $region12
      $region11: #{tpu_custom_call.1} parent=5 // pred_region
        %s230 = ssub.s32 %s17, 1
        // Predicated region
        $region13: #{tpu_custom_call.1} parent=11 // pred_check
          %p231 = pneg %p64
        $region14: #{tpu_custom_call.1} parent=11 // pred_check_branch
          %233 = sbr.rel (%p231) target = $region16
        $region15: #{tpu_custom_call.1} parent=11 // pred_region
          _
        $region16: #{tpu_custom_call.1} parent=11 // pred_fallthru
          _
        // Predicated region
        $region17: #{tpu_custom_call.1} parent=11 // pred_check
          %p234 = pneg %p85
        $region18: #{tpu_custom_call.1} parent=11 // pred_check_branch
          %236 = sbr.rel (%p234) target = $region20
        $region19: #{tpu_custom_call.1} parent=11 // pred_region
          _
        $region20: #{tpu_custom_call.1} parent=11 // pred_fallthru
          _
        // Predicated region
        $region21: #{tpu_custom_call.1} parent=11 // pred_check
          %p237 = pneg %p106
        $region22: #{tpu_custom_call.1} parent=11 // pred_check_branch
          %239 = sbr.rel (%p237) target = $region24
        $region23: #{tpu_custom_call.1} parent=11 // pred_region
          _
        $region24: #{tpu_custom_call.1} parent=11 // pred_fallthru
          _
        // Predicated region
        $region25: #{tpu_custom_call.1} parent=11 // pred_check
          %p240 = pneg %p127
        $region26: #{tpu_custom_call.1} parent=11 // pred_check_branch
          %242 = sbr.rel (%p240) target = $region28
        $region27: #{tpu_custom_call.1} parent=11 // pred_region
          _
        $region28: #{tpu_custom_call.1} parent=11 // pred_fallthru
          _
        // Predicated region
        $region29: #{tpu_custom_call.1} parent=11 // pred_check
          %p243 = pneg %p148
        $region30: #{tpu_custom_call.1} parent=11 // pred_check_branch
          %245 = sbr.rel (%p243) target = $region32
        $region31: #{tpu_custom_call.1} parent=11 // pred_region
          _
        $region32: #{tpu_custom_call.1} parent=11 // pred_fallthru
          _
        // Predicated region
        $region33: #{tpu_custom_call.1} parent=11 // pred_check
          %p246 = pneg %p169
        $region34: #{tpu_custom_call.1} parent=11 // pred_check_branch
          %248 = sbr.rel (%p246) target = $region36
        $region35: #{tpu_custom_call.1} parent=11 // pred_region
          _
        $region36: #{tpu_custom_call.1} parent=11 // pred_fallthru
          _
        // Predicated region
        $region37: #{tpu_custom_call.1} parent=11 // pred_check
          %p249 = pneg %p190
        $region38: #{tpu_custom_call.1} parent=11 // pred_check_branch
          %251 = sbr.rel (%p249) target = $region40
        $region39: #{tpu_custom_call.1} parent=11 // pred_region
          _
        $region40: #{tpu_custom_call.1} parent=11 // pred_fallthru
          _
      $region12: #{tpu_custom_call.1} parent=5 // pred_fallthru
        _
      %p252 = scmp.lt.s32.totalorder %s17, 2
      // Predicated region
      $region41: #{tpu_custom_call.1} parent=5 // pred_check
        %p253 = pneg %p252
      $region42: #{tpu_custom_call.1} parent=5 // pred_check_branch
        %255 = sbr.rel (%p253) target = $region44
      $region43: #{tpu_custom_call.1} parent=5 // pred_region
        // Predicated region
        $region45: #{tpu_custom_call.1} parent=43 // pred_check
          %p256 = pneg %p37
        $region46: #{tpu_custom_call.1} parent=43 // pred_check_branch
          %258 = sbr.rel (%p256) target = $region48
        $region47: #{tpu_custom_call.1} parent=43 // pred_region
          %p259 = scmp.lt.s32.totalorder %s17, 1
          %s260 = scalar_select %p259, %s17, 1
          %s261 = smul.addr %s260, 2
          %s262 = smul.addr %s261, 8
          %s263 = scalar_lea.vmem %s0, %s262
        $region48: #{tpu_custom_call.1} parent=43 // pred_fallthru
          _
      $region44: #{tpu_custom_call.1} parent=5 // pred_fallthru
        _
      %p264 = scmp.le.s32.totalorder 1, %s17
      %p265 = scmp.lt.s32.totalorder %s17, 3
      %p266 = pnand %p264, %p265
      %p267 = pneg %p266
      // Predicated region
      $region49: #{tpu_custom_call.1} parent=5 // pred_check
        _
      $region50: #{tpu_custom_call.1} parent=5 // pred_check_branch
        %269 = sbr.rel (%p266) target = $region52
      $region51: #{tpu_custom_call.1} parent=5 // pred_region
        %s270 = ssub.s32 %s17, 1
        %p271 = scmp.lt.s32.totalorder %s22, 1
        %s272 = scalar_select %p271, %s22, 1
        %s273 = smul.addr %s272, 2
        %s274 = smul.addr %s273, 8
        %s275 = scalar_lea.vmem %s0, %s274
        %p276 = pneg %p43
        %p277 = pneg %p40
        %p278 = pneg %p64
        %p279 = pneg %p61
        %p280 = pneg %p85
        %p281 = pneg %p82
        %p282 = pneg %p106
        %p283 = pneg %p103
        %p284 = pneg %p127
        %p285 = pneg %p124
        %p286 = pneg %p148
        %p287 = pneg %p145
        %p288 = pneg %p169
        %p289 = pneg %p166
        %p290 = pneg %p190
        %p291 = pneg %p187
        %p292 = pneg %p216
        %p293 = pneg %p213
        %s294 = sand.u32 %s203, 1
        %s295 = scalar_lea.sflag [#allocation3], %s294
        %s296 = sand.u32 %s203, 1
        %s297 = smul.addr %s296, 16
        %s298 = scalar_lea.vmem [#allocation2], %s297
        %p299 = scmp.lt.s32.totalorder %s22, 1
        %s300 = scalar_select %p299, %s22, 1
        %s301 = smul.addr %s300, 2
        %s302 = smul.addr %s301, 8
        %s303 = scalar_lea.vmem %s0, %s302
        %v304 = vld [vmem:[%s303] sm:$0xff]
        %v305 = vld [vmem:[%s303 + $0x8] sm:$0xff]
        %v306 = vld [vmem:[%s1] sm:$0xff]
        %v307 = vld [vmem:[%s1 + $0x8] sm:$0xff]
        %v308 = vld [vmem:[%s1 + $0x10] sm:$0xff]
        %v309 = vld [vmem:[%s1 + $0x18] sm:$0xff]
        %v310 = vld [vmem:[%s1 + $0x20] sm:$0xff]
        %v311 = vld [vmem:[%s1 + $0x28] sm:$0xff]
        %v312 = vld [vmem:[%s1 + $0x30] sm:$0xff]
        %v313 = vld [vmem:[%s1 + $0x38] sm:$0xff]
        %v314 = vld [vmem:[%s1 + $0x40] sm:$0xff]
        %v315 = vld [vmem:[%s1 + $0x48] sm:$0xff]
        %v316 = vld [vmem:[%s1 + $0x50] sm:$0xff]
        %v317 = vld [vmem:[%s1 + $0x58] sm:$0xff]
        %v318 = vld [vmem:[%s1 + $0x60] sm:$0xff]
        %v319 = vld [vmem:[%s1 + $0x68] sm:$0xff]
        %v320 = vld [vmem:[%s1 + $0x70] sm:$0xff]
        %v321 = vld [vmem:[%s1 + $0x78] sm:$0xff]
        %v322 = vld [vmem:[%s2] sm:$0x1]
        %v324 = vperm.slane %v322, 0
        %326 = vmatpush.msra.mxu0 %v321
        %327 = vmatpush.msra.mxu0 %v320
        %328 = vmatpush.msra.mxu0 %v319
        %329 = vmatpush.msra.mxu0 %v318
        %330 = vmatpush.msra.mxu0 %v317
        %331 = vmatpush.msra.mxu0 %v316
        %332 = vmatpush.msra.mxu0 %v315
        %333 = vmatpush.msra.mxu0 %v314
        %334 = vmatpush.msra.mxu0 %v313
        %335 = vmatpush.msra.mxu0 %v312
        %336 = vmatpush.msra.mxu0 %v311
        %337 = vmatpush.msra.mxu0 %v310
        %338 = vmatpush.msra.mxu0 %v309
        %339 = vmatpush.msra.mxu0 %v308
        %340 = vmatpush.msra.mxu0 %v307
        %341 = vmatpush.msra.mxu0 %v306
        %342 = vmatmul.f32.gmra.mxu0 %v304
        %v343 = vpop.f32.mrf.mxu0
        %v344 = vadd.f32 %v324, %v343
        %345 = vmatmul.f32.gmra.mxu0 %v305
        %v346 = vpop.f32.mrf.mxu0
        %v347 = vadd.f32 %v324, %v346
        %348 = vdwg.mxu0
        %v349 = vadd.f32 %v304, %v305
        %v350 = vrot.slane %v349, 4
        %v351 = vadd.f32 %v349, %v350
        %v352 = vrot.slane %v351, 2
        %v353 = vadd.f32 %v351, %v352
        %v354 = vrot.slane %v353, 1
        %v355 = vadd.f32 %v353, %v354
        %v356 = vrcp.pop 16.0
        %v357 = vmul.f32 16.0, %v356
        %v358 = vsub.f32 1.0, %v357
        %v359 = vmul.f32 %v356, %v358
        %v360 = vadd.f32 %v356, %v359
        %vm361 = vweird.f32 %v356
        %v362 = vsel %vm361, %v356, %v360
        %v363 = vmul.f32 %v355, %v362
        %v364 = vld [vmem:[%s3] sm:$0xff]
        %v365 = vld [vmem:[%s3 + $0x8] sm:$0xff]
        %v366 = vld [vmem:[%s3 + $0x10] sm:$0xff]
        %v367 = vld [vmem:[%s3 + $0x18] sm:$0xff]
        %v368 = vld [vmem:[%s3 + $0x20] sm:$0xff]
        %v369 = vld [vmem:[%s3 + $0x28] sm:$0xff]
        %v370 = vld [vmem:[%s3 + $0x30] sm:$0xff]
        %v371 = vld [vmem:[%s3 + $0x38] sm:$0xff]
        %v372 = vld [vmem:[%s3 + $0x40] sm:$0xff]
        %v373 = vld [vmem:[%s3 + $0x48] sm:$0xff]
        %v374 = vld [vmem:[%s3 + $0x50] sm:$0xff]
        %v375 = vld [vmem:[%s3 + $0x58] sm:$0xff]
        %v376 = vld [vmem:[%s3 + $0x60] sm:$0xff]
        %v377 = vld [vmem:[%s3 + $0x68] sm:$0xff]
        %v378 = vld [vmem:[%s3 + $0x70] sm:$0xff]
        %v379 = vld [vmem:[%s3 + $0x78] sm:$0xff]
        %v380 = vld [vmem:[%s4] sm:$0x1]
        %381 = vmatpush.msra.mxu0 %v379
        %382 = vmatpush.msra.mxu0 %v378
        %383 = vmatpush.msra.mxu0 %v377
        %384 = vmatpush.msra.mxu0 %v376
        %385 = vmatpush.msra.mxu0 %v375
        %386 = vmatpush.msra.mxu0 %v374
        %387 = vmatpush.msra.mxu0 %v373
        %388 = vmatpush.msra.mxu0 %v372
        %389 = vmatpush.msra.mxu0 %v371
        %390 = vmatpush.msra.mxu0 %v370
        %391 = vmatpush.msra.mxu0 %v369
        %392 = vmatpush.msra.mxu0 %v368
        %393 = vmatpush.msra.mxu0 %v367
        %394 = vmatpush.msra.mxu0 %v366
        %395 = vmatpush.msra.mxu0 %v365
        %396 = vmatpush.msra.mxu0 %v364
        %397 = vmatmul.f32.gmra.mxu0 %v363
        %v398 = vpop.f32.mrf.mxu0
        %v399 = vadd.f32 %v380, %v398
        %400 = vdwg.mxu0
        %v401 = vld [vmem:[%s6] sm:$0xff]
        %v402 = vld [vmem:[%s6 + $0x8] sm:$0xff]
        %v403 = vld [vmem:[%s6 + $0x10] sm:$0xff]
        %v404 = vld [vmem:[%s6 + $0x18] sm:$0xff]
        %v405 = vld [vmem:[%s6 + $0x20] sm:$0xff]
        %v406 = vld [vmem:[%s6 + $0x28] sm:$0xff]
        %v407 = vld [vmem:[%s6 + $0x30] sm:$0xff]
        %v408 = vld [vmem:[%s6 + $0x38] sm:$0xff]
        %v409 = vld [vmem:[%s6 + $0x40] sm:$0xff]
        %v410 = vld [vmem:[%s6 + $0x48] sm:$0xff]
        %v411 = vld [vmem:[%s6 + $0x50] sm:$0xff]
        %v412 = vld [vmem:[%s6 + $0x58] sm:$0xff]
        %v413 = vld [vmem:[%s6 + $0x60] sm:$0xff]
        %v414 = vld [vmem:[%s6 + $0x68] sm:$0xff]
        %v415 = vld [vmem:[%s6 + $0x70] sm:$0xff]
        %v416 = vld [vmem:[%s6 + $0x78] sm:$0xff]
        %v417 = vperm.slane %v399, 0
        %v418 = vlaneseq
        %v419 = vshrl.u32 %v418, 7
        %v420 = vadd.s32 %v419, 16
        %421 = vset.pattern.permute.xlu0 %v420
        %422 = vperm.xlu0 %421, %v417
        %v423 = vpop.permute.xlu0 %422
        %v424 = vsub.f32 %v417, %v423
        %v425 = vtanh.pop %v424
        %v426 = vld [vmem:[%s5] sm:$0xff]
        %v427 = vld [vmem:[%s5 + $0x8] sm:$0xff]
        %v428 = vld [vmem:[%s5 + $0x10] sm:$0xff]
        %v429 = vld [vmem:[%s5 + $0x18] sm:$0xff]
        %v430 = vld [vmem:[%s5 + $0x20] sm:$0xff]
        %v431 = vld [vmem:[%s5 + $0x28] sm:$0xff]
        %v432 = vld [vmem:[%s5 + $0x30] sm:$0xff]
        %v433 = vld [vmem:[%s5 + $0x38] sm:$0xff]
        %v434 = vld [vmem:[%s5 + $0x40] sm:$0xff]
        %v435 = vld [vmem:[%s5 + $0x48] sm:$0xff]
        %v436 = vld [vmem:[%s5 + $0x50] sm:$0xff]
        %v437 = vld [vmem:[%s5 + $0x58] sm:$0xff]
        %v438 = vld [vmem:[%s5 + $0x60] sm:$0xff]
        %v439 = vld [vmem:[%s5 + $0x68] sm:$0xff]
        %v440 = vld [vmem:[%s5 + $0x70] sm:$0xff]
        %v441 = vld [vmem:[%s5 + $0x78] sm:$0xff]
        %v442 = vmul.f32 %v426, %v425
        %v443 = vmul.f32 %v427, %v425
        %v444 = vmul.f32 %v428, %v425
        %v445 = vmul.f32 %v429, %v425
        %v446 = vmul.f32 %v430, %v425
        %v447 = vmul.f32 %v431, %v425
        %v448 = vmul.f32 %v432, %v425
        %v449 = vmul.f32 %v433, %v425
        %v450 = vmul.f32 %v434, %v425
        %v451 = vmul.f32 %v435, %v425
        %v452 = vmul.f32 %v436, %v425
        %v453 = vmul.f32 %v437, %v425
        %v454 = vmul.f32 %v438, %v425
        %v455 = vmul.f32 %v439, %v425
        %v456 = vmul.f32 %v440, %v425
        %v457 = vmul.f32 %v441, %v425
        %v458 = vadd.f32 %v401, %v442
        %v459 = vadd.f32 %v402, %v443
        %v460 = vadd.f32 %v403, %v444
        %v461 = vadd.f32 %v404, %v445
        %v462 = vadd.f32 %v405, %v446
        %v463 = vadd.f32 %v406, %v447
        %v464 = vadd.f32 %v407, %v448
        %v465 = vadd.f32 %v408, %v449
        %v466 = vadd.f32 %v409, %v450
        %v467 = vadd.f32 %v410, %v451
        %v468 = vadd.f32 %v411, %v452
        %v469 = vadd.f32 %v412, %v453
        %v470 = vadd.f32 %v413, %v454
        %v471 = vadd.f32 %v414, %v455
        %v472 = vadd.f32 %v415, %v456
        %v473 = vadd.f32 %v416, %v457
        %v474 = vlaneseq
        %v475 = vshrl.u32 %v474, 7
        %v476 = vadd.s32 %v475, 24
        %477 = vset.pattern.permute.xlu0 %v476
        %478 = vperm.xlu0 %477, %v417
        %v479 = vpop.permute.xlu0 %478
        %v480 = vsub.f32 %v417, %v479
        %v481 = vtanh.pop %v480
        %s482 = scalar_lea.vmem %s5, 128
        %v483 = vld [vmem:[%s482] sm:$0xff]
        %v484 = vld [vmem:[%s482 + $0x8] sm:$0xff]
        %v485 = vld [vmem:[%s482 + $0x10] sm:$0xff]
        %v486 = vld [vmem:[%s482 + $0x18] sm:$0xff]
        %v487 = vld [vmem:[%s482 + $0x20] sm:$0xff]
        %v488 = vld [vmem:[%s482 + $0x28] sm:$0xff]
        %v489 = vld [vmem:[%s482 + $0x30] sm:$0xff]
        %v490 = vld [vmem:[%s482 + $0x38] sm:$0xff]
        %v491 = vld [vmem:[%s482 + $0x40] sm:$0xff]
        %v492 = vld [vmem:[%s482 + $0x48] sm:$0xff]
        %v493 = vld [vmem:[%s482 + $0x50] sm:$0xff]
        %v494 = vld [vmem:[%s482 + $0x58] sm:$0xff]
        %v495 = vld [vmem:[%s482 + $0x60] sm:$0xff]
        %v496 = vld [vmem:[%s482 + $0x68] sm:$0xff]
        %v497 = vld [vmem:[%s482 + $0x70] sm:$0xff]
        %v498 = vld [vmem:[%s482 + $0x78] sm:$0xff]
        %500 = vrot.lane.b32.xlu0 %v481, 120
        %v501 = vpop.permute.xlu0 %500
        %v503 = vmul.f32 %v483, %v501
        %v504 = vmul.f32 %v484, %v501
        %v505 = vmul.f32 %v485, %v501
        %v506 = vmul.f32 %v486, %v501
        %v507 = vmul.f32 %v487, %v501
        %v508 = vmul.f32 %v488, %v501
        %v509 = vmul.f32 %v489, %v501
        %v510 = vmul.f32 %v490, %v501
        %v511 = vmul.f32 %v491, %v501
        %v512 = vmul.f32 %v492, %v501
        %v513 = vmul.f32 %v493, %v501
        %v514 = vmul.f32 %v494, %v501
        %v515 = vmul.f32 %v495, %v501
        %v516 = vmul.f32 %v496, %v501
        %v517 = vmul.f32 %v497, %v501
        %v518 = vmul.f32 %v498, %v501
        %v519 = vadd.f32 %v458, %v503
        %v520 = vadd.f32 %v459, %v504
        %v521 = vadd.f32 %v460, %v505
        %v522 = vadd.f32 %v461, %v506
        %v523 = vadd.f32 %v462, %v507
        %v524 = vadd.f32 %v463, %v508
        %v525 = vadd.f32 %v464, %v509
        %v526 = vadd.f32 %v465, %v510
        %v527 = vadd.f32 %v466, %v511
        %v528 = vadd.f32 %v467, %v512
        %v529 = vadd.f32 %v468, %v513
        %v530 = vadd.f32 %v469, %v514
        %v531 = vadd.f32 %v470, %v515
        %v532 = vadd.f32 %v471, %v516
        %v533 = vadd.f32 %v472, %v517
        %v534 = vadd.f32 %v473, %v518
        %551 = vrot.lane.b32.xlu0 %v519, 8
        %v552 = vpop.permute.xlu0 %551
        %553 = vrot.lane.b32.xlu0 %v520, 8
        %v554 = vpop.permute.xlu0 %553
        %555 = vrot.lane.b32.xlu0 %v521, 8
        %v556 = vpop.permute.xlu0 %555
        %557 = vrot.lane.b32.xlu0 %v522, 8
        %v558 = vpop.permute.xlu0 %557
        %559 = vrot.lane.b32.xlu0 %v523, 8
        %v560 = vpop.permute.xlu0 %559
        %561 = vrot.lane.b32.xlu0 %v524, 8
        %v562 = vpop.permute.xlu0 %561
        %563 = vrot.lane.b32.xlu0 %v525, 8
        %v564 = vpop.permute.xlu0 %563
        %565 = vrot.lane.b32.xlu0 %v526, 8
        %v566 = vpop.permute.xlu0 %565
        %567 = vrot.lane.b32.xlu0 %v527, 8
        %v568 = vpop.permute.xlu0 %567
        %569 = vrot.lane.b32.xlu0 %v528, 8
        %v570 = vpop.permute.xlu0 %569
        %571 = vrot.lane.b32.xlu0 %v529, 8
        %v572 = vpop.permute.xlu0 %571
        %573 = vrot.lane.b32.xlu0 %v530, 8
        %v574 = vpop.permute.xlu0 %573
        %575 = vrot.lane.b32.xlu0 %v531, 8
        %v576 = vpop.permute.xlu0 %575
        %577 = vrot.lane.b32.xlu0 %v532, 8
        %v578 = vpop.permute.xlu0 %577
        %579 = vrot.lane.b32.xlu0 %v533, 8
        %v580 = vpop.permute.xlu0 %579
        %581 = vrot.lane.b32.xlu0 %v534, 8
        %v582 = vpop.permute.xlu0 %581
        %599 = vrot.lane.b32.xlu0 %v519, 16
        %v600 = vpop.permute.xlu0 %599
        %601 = vrot.lane.b32.xlu0 %v520, 16
        %v602 = vpop.permute.xlu0 %601
        %603 = vrot.lane.b32.xlu0 %v521, 16
        %v604 = vpop.permute.xlu0 %603
        %605 = vrot.lane.b32.xlu0 %v522, 16
        %v606 = vpop.permute.xlu0 %605
        %607 = vrot.lane.b32.xlu0 %v523, 16
        %v608 = vpop.permute.xlu0 %607
        %609 = vrot.lane.b32.xlu0 %v524, 16
        %v610 = vpop.permute.xlu0 %609
        %611 = vrot.lane.b32.xlu0 %v525, 16
        %v612 = vpop.permute.xlu0 %611
        %613 = vrot.lane.b32.xlu0 %v526, 16
        %v614 = vpop.permute.xlu0 %613
        %615 = vrot.lane.b32.xlu0 %v527, 16
        %v616 = vpop.permute.xlu0 %615
        %617 = vrot.lane.b32.xlu0 %v528, 16
        %v618 = vpop.permute.xlu0 %617
        %619 = vrot.lane.b32.xlu0 %v529, 16
        %v620 = vpop.permute.xlu0 %619
        %621 = vrot.lane.b32.xlu0 %v530, 16
        %v622 = vpop.permute.xlu0 %621
        %623 = vrot.lane.b32.xlu0 %v531, 16
        %v624 = vpop.permute.xlu0 %623
        %625 = vrot.lane.b32.xlu0 %v532, 16
        %v626 = vpop.permute.xlu0 %625
        %627 = vrot.lane.b32.xlu0 %v533, 16
        %v628 = vpop.permute.xlu0 %627
        %629 = vrot.lane.b32.xlu0 %v534, 16
        %v630 = vpop.permute.xlu0 %629
        %647 = vrot.lane.b32.xlu0 %v519, 24
        %v648 = vpop.permute.xlu0 %647
        %649 = vrot.lane.b32.xlu0 %v520, 24
        %v650 = vpop.permute.xlu0 %649
        %651 = vrot.lane.b32.xlu0 %v521, 24
        %v652 = vpop.permute.xlu0 %651
        %653 = vrot.lane.b32.xlu0 %v522, 24
        %v654 = vpop.permute.xlu0 %653
        %655 = vrot.lane.b32.xlu0 %v523, 24
        %v656 = vpop.permute.xlu0 %655
        %657 = vrot.lane.b32.xlu0 %v524, 24
        %v658 = vpop.permute.xlu0 %657
        %659 = vrot.lane.b32.xlu0 %v525, 24
        %v660 = vpop.permute.xlu0 %659
        %661 = vrot.lane.b32.xlu0 %v526, 24
        %v662 = vpop.permute.xlu0 %661
        %663 = vrot.lane.b32.xlu0 %v527, 24
        %v664 = vpop.permute.xlu0 %663
        %665 = vrot.lane.b32.xlu0 %v528, 24
        %v666 = vpop.permute.xlu0 %665
        %667 = vrot.lane.b32.xlu0 %v529, 24
        %v668 = vpop.permute.xlu0 %667
        %669 = vrot.lane.b32.xlu0 %v530, 24
        %v670 = vpop.permute.xlu0 %669
        %671 = vrot.lane.b32.xlu0 %v531, 24
        %v672 = vpop.permute.xlu0 %671
        %673 = vrot.lane.b32.xlu0 %v532, 24
        %v674 = vpop.permute.xlu0 %673
        %675 = vrot.lane.b32.xlu0 %v533, 24
        %v676 = vpop.permute.xlu0 %675
        %677 = vrot.lane.b32.xlu0 %v534, 24
        %v678 = vpop.permute.xlu0 %677
        %695 = vrot.lane.b32.xlu0 %v519, 32
        %v696 = vpop.permute.xlu0 %695
        %697 = vrot.lane.b32.xlu0 %v520, 32
        %v698 = vpop.permute.xlu0 %697
        %699 = vrot.lane.b32.xlu0 %v521, 32
        %v700 = vpop.permute.xlu0 %699
        %701 = vrot.lane.b32.xlu0 %v522, 32
        %v702 = vpop.permute.xlu0 %701
        %703 = vrot.lane.b32.xlu0 %v523, 32
        %v704 = vpop.permute.xlu0 %703
        %705 = vrot.lane.b32.xlu0 %v524, 32
        %v706 = vpop.permute.xlu0 %705
        %707 = vrot.lane.b32.xlu0 %v525, 32
        %v708 = vpop.permute.xlu0 %707
        %709 = vrot.lane.b32.xlu0 %v526, 32
        %v710 = vpop.permute.xlu0 %709
        %711 = vrot.lane.b32.xlu0 %v527, 32
        %v712 = vpop.permute.xlu0 %711
        %713 = vrot.lane.b32.xlu0 %v528, 32
        %v714 = vpop.permute.xlu0 %713
        %715 = vrot.lane.b32.xlu0 %v529, 32
        %v716 = vpop.permute.xlu0 %715
        %717 = vrot.lane.b32.xlu0 %v530, 32
        %v718 = vpop.permute.xlu0 %717
        %719 = vrot.lane.b32.xlu0 %v531, 32
        %v720 = vpop.permute.xlu0 %719
        %721 = vrot.lane.b32.xlu0 %v532, 32
        %v722 = vpop.permute.xlu0 %721
        %723 = vrot.lane.b32.xlu0 %v533, 32
        %v724 = vpop.permute.xlu0 %723
        %725 = vrot.lane.b32.xlu0 %v534, 32
        %v726 = vpop.permute.xlu0 %725
        %743 = vrot.lane.b32.xlu0 %v519, 40
        %v744 = vpop.permute.xlu0 %743
        %745 = vrot.lane.b32.xlu0 %v520, 40
        %v746 = vpop.permute.xlu0 %745
        %747 = vrot.lane.b32.xlu0 %v521, 40
        %v748 = vpop.permute.xlu0 %747
        %749 = vrot.lane.b32.xlu0 %v522, 40
        %v750 = vpop.permute.xlu0 %749
        %751 = vrot.lane.b32.xlu0 %v523, 40
        %v752 = vpop.permute.xlu0 %751
        %753 = vrot.lane.b32.xlu0 %v524, 40
        %v754 = vpop.permute.xlu0 %753
        %755 = vrot.lane.b32.xlu0 %v525, 40
        %v756 = vpop.permute.xlu0 %755
        %757 = vrot.lane.b32.xlu0 %v526, 40
        %v758 = vpop.permute.xlu0 %757
        %759 = vrot.lane.b32.xlu0 %v527, 40
        %v760 = vpop.permute.xlu0 %759
        %761 = vrot.lane.b32.xlu0 %v528, 40
        %v762 = vpop.permute.xlu0 %761
        %763 = vrot.lane.b32.xlu0 %v529, 40
        %v764 = vpop.permute.xlu0 %763
        %765 = vrot.lane.b32.xlu0 %v530, 40
        %v766 = vpop.permute.xlu0 %765
        %767 = vrot.lane.b32.xlu0 %v531, 40
        %v768 = vpop.permute.xlu0 %767
        %769 = vrot.lane.b32.xlu0 %v532, 40
        %v770 = vpop.permute.xlu0 %769
        %771 = vrot.lane.b32.xlu0 %v533, 40
        %v772 = vpop.permute.xlu0 %771
        %773 = vrot.lane.b32.xlu0 %v534, 40
        %v774 = vpop.permute.xlu0 %773
        %791 = vrot.lane.b32.xlu0 %v519, 48
        %v792 = vpop.permute.xlu0 %791
        %793 = vrot.lane.b32.xlu0 %v520, 48
        %v794 = vpop.permute.xlu0 %793
        %795 = vrot.lane.b32.xlu0 %v521, 48
        %v796 = vpop.permute.xlu0 %795
        %797 = vrot.lane.b32.xlu0 %v522, 48
        %v798 = vpop.permute.xlu0 %797
        %799 = vrot.lane.b32.xlu0 %v523, 48
        %v800 = vpop.permute.xlu0 %799
        %801 = vrot.lane.b32.xlu0 %v524, 48
        %v802 = vpop.permute.xlu0 %801
        %803 = vrot.lane.b32.xlu0 %v525, 48
        %v804 = vpop.permute.xlu0 %803
        %805 = vrot.lane.b32.xlu0 %v526, 48
        %v806 = vpop.permute.xlu0 %805
        %807 = vrot.lane.b32.xlu0 %v527, 48
        %v808 = vpop.permute.xlu0 %807
        %809 = vrot.lane.b32.xlu0 %v528, 48
        %v810 = vpop.permute.xlu0 %809
        %811 = vrot.lane.b32.xlu0 %v529, 48
        %v812 = vpop.permute.xlu0 %811
        %813 = vrot.lane.b32.xlu0 %v530, 48
        %v814 = vpop.permute.xlu0 %813
        %815 = vrot.lane.b32.xlu0 %v531, 48
        %v816 = vpop.permute.xlu0 %815
        %817 = vrot.lane.b32.xlu0 %v532, 48
        %v818 = vpop.permute.xlu0 %817
        %819 = vrot.lane.b32.xlu0 %v533, 48
        %v820 = vpop.permute.xlu0 %819
        %821 = vrot.lane.b32.xlu0 %v534, 48
        %v822 = vpop.permute.xlu0 %821
        %839 = vrot.lane.b32.xlu0 %v519, 56
        %v840 = vpop.permute.xlu0 %839
        %841 = vrot.lane.b32.xlu0 %v520, 56
        %v842 = vpop.permute.xlu0 %841
        %843 = vrot.lane.b32.xlu0 %v521, 56
        %v844 = vpop.permute.xlu0 %843
        %845 = vrot.lane.b32.xlu0 %v522, 56
        %v846 = vpop.permute.xlu0 %845
        %847 = vrot.lane.b32.xlu0 %v523, 56
        %v848 = vpop.permute.xlu0 %847
        %849 = vrot.lane.b32.xlu0 %v524, 56
        %v850 = vpop.permute.xlu0 %849
        %851 = vrot.lane.b32.xlu0 %v525, 56
        %v852 = vpop.permute.xlu0 %851
        %853 = vrot.lane.b32.xlu0 %v526, 56
        %v854 = vpop.permute.xlu0 %853
        %855 = vrot.lane.b32.xlu0 %v527, 56
        %v856 = vpop.permute.xlu0 %855
        %857 = vrot.lane.b32.xlu0 %v528, 56
        %v858 = vpop.permute.xlu0 %857
        %859 = vrot.lane.b32.xlu0 %v529, 56
        %v860 = vpop.permute.xlu0 %859
        %861 = vrot.lane.b32.xlu0 %v530, 56
        %v862 = vpop.permute.xlu0 %861
        %863 = vrot.lane.b32.xlu0 %v531, 56
        %v864 = vpop.permute.xlu0 %863
        %865 = vrot.lane.b32.xlu0 %v532, 56
        %v866 = vpop.permute.xlu0 %865
        %867 = vrot.lane.b32.xlu0 %v533, 56
        %v868 = vpop.permute.xlu0 %867
        %869 = vrot.lane.b32.xlu0 %v534, 56
        %v870 = vpop.permute.xlu0 %869
        %887 = vrot.lane.b32.xlu0 %v519, 64
        %v888 = vpop.permute.xlu0 %887
        %889 = vrot.lane.b32.xlu0 %v520, 64
        %v890 = vpop.permute.xlu0 %889
        %891 = vrot.lane.b32.xlu0 %v521, 64
        %v892 = vpop.permute.xlu0 %891
        %893 = vrot.lane.b32.xlu0 %v522, 64
        %v894 = vpop.permute.xlu0 %893
        %895 = vrot.lane.b32.xlu0 %v523, 64
        %v896 = vpop.permute.xlu0 %895
        %897 = vrot.lane.b32.xlu0 %v524, 64
        %v898 = vpop.permute.xlu0 %897
        %899 = vrot.lane.b32.xlu0 %v525, 64
        %v900 = vpop.permute.xlu0 %899
        %901 = vrot.lane.b32.xlu0 %v526, 64
        %v902 = vpop.permute.xlu0 %901
        %903 = vrot.lane.b32.xlu0 %v527, 64
        %v904 = vpop.permute.xlu0 %903
        %905 = vrot.lane.b32.xlu0 %v528, 64
        %v906 = vpop.permute.xlu0 %905
        %907 = vrot.lane.b32.xlu0 %v529, 64
        %v908 = vpop.permute.xlu0 %907
        %909 = vrot.lane.b32.xlu0 %v530, 64
        %v910 = vpop.permute.xlu0 %909
        %911 = vrot.lane.b32.xlu0 %v531, 64
        %v912 = vpop.permute.xlu0 %911
        %913 = vrot.lane.b32.xlu0 %v532, 64
        %v914 = vpop.permute.xlu0 %913
        %915 = vrot.lane.b32.xlu0 %v533, 64
        %v916 = vpop.permute.xlu0 %915
        %917 = vrot.lane.b32.xlu0 %v534, 64
        %v918 = vpop.permute.xlu0 %917
        %935 = vrot.lane.b32.xlu0 %v519, 72
        %v936 = vpop.permute.xlu0 %935
        %937 = vrot.lane.b32.xlu0 %v520, 72
        %v938 = vpop.permute.xlu0 %937
        %939 = vrot.lane.b32.xlu0 %v521, 72
        %v940 = vpop.permute.xlu0 %939
        %941 = vrot.lane.b32.xlu0 %v522, 72
        %v942 = vpop.permute.xlu0 %941
        %943 = vrot.lane.b32.xlu0 %v523, 72
        %v944 = vpop.permute.xlu0 %943
        %945 = vrot.lane.b32.xlu0 %v524, 72
        %v946 = vpop.permute.xlu0 %945
        %947 = vrot.lane.b32.xlu0 %v525, 72
        %v948 = vpop.permute.xlu0 %947
        %949 = vrot.lane.b32.xlu0 %v526, 72
        %v950 = vpop.permute.xlu0 %949
        %951 = vrot.lane.b32.xlu0 %v527, 72
        %v952 = vpop.permute.xlu0 %951
        %953 = vrot.lane.b32.xlu0 %v528, 72
        %v954 = vpop.permute.xlu0 %953
        %955 = vrot.lane.b32.xlu0 %v529, 72
        %v956 = vpop.permute.xlu0 %955
        %957 = vrot.lane.b32.xlu0 %v530, 72
        %v958 = vpop.permute.xlu0 %957
        %959 = vrot.lane.b32.xlu0 %v531, 72
        %v960 = vpop.permute.xlu0 %959
        %961 = vrot.lane.b32.xlu0 %v532, 72
        %v962 = vpop.permute.xlu0 %961
        %963 = vrot.lane.b32.xlu0 %v533, 72
        %v964 = vpop.permute.xlu0 %963
        %965 = vrot.lane.b32.xlu0 %v534, 72
        %v966 = vpop.permute.xlu0 %965
        %983 = vrot.lane.b32.xlu0 %v519, 80
        %v984 = vpop.permute.xlu0 %983
        %985 = vrot.lane.b32.xlu0 %v520, 80
        %v986 = vpop.permute.xlu0 %985
        %987 = vrot.lane.b32.xlu0 %v521, 80
        %v988 = vpop.permute.xlu0 %987
        %989 = vrot.lane.b32.xlu0 %v522, 80
        %v990 = vpop.permute.xlu0 %989
        %991 = vrot.lane.b32.xlu0 %v523, 80
        %v992 = vpop.permute.xlu0 %991
        %993 = vrot.lane.b32.xlu0 %v524, 80
        %v994 = vpop.permute.xlu0 %993
        %995 = vrot.lane.b32.xlu0 %v525, 80
        %v996 = vpop.permute.xlu0 %995
        %997 = vrot.lane.b32.xlu0 %v526, 80
        %v998 = vpop.permute.xlu0 %997
        %999 = vrot.lane.b32.xlu0 %v527, 80
        %v1000 = vpop.permute.xlu0 %999
        %1001 = vrot.lane.b32.xlu0 %v528, 80
        %v1002 = vpop.permute.xlu0 %1001
        %1003 = vrot.lane.b32.xlu0 %v529, 80
        %v1004 = vpop.permute.xlu0 %1003
        %1005 = vrot.lane.b32.xlu0 %v530, 80
        %v1006 = vpop.permute.xlu0 %1005
        %1007 = vrot.lane.b32.xlu0 %v531, 80
        %v1008 = vpop.permute.xlu0 %1007
        %1009 = vrot.lane.b32.xlu0 %v532, 80
        %v1010 = vpop.permute.xlu0 %1009
        %1011 = vrot.lane.b32.xlu0 %v533, 80
        %v1012 = vpop.permute.xlu0 %1011
        %1013 = vrot.lane.b32.xlu0 %v534, 80
        %v1014 = vpop.permute.xlu0 %1013
        %1031 = vrot.lane.b32.xlu0 %v519, 88
        %v1032 = vpop.permute.xlu0 %1031
        %1033 = vrot.lane.b32.xlu0 %v520, 88
        %v1034 = vpop.permute.xlu0 %1033
        %1035 = vrot.lane.b32.xlu0 %v521, 88
        %v1036 = vpop.permute.xlu0 %1035
        %1037 = vrot.lane.b32.xlu0 %v522, 88
        %v1038 = vpop.permute.xlu0 %1037
        %1039 = vrot.lane.b32.xlu0 %v523, 88
        %v1040 = vpop.permute.xlu0 %1039
        %1041 = vrot.lane.b32.xlu0 %v524, 88
        %v1042 = vpop.permute.xlu0 %1041
        %1043 = vrot.lane.b32.xlu0 %v525, 88
        %v1044 = vpop.permute.xlu0 %1043
        %1045 = vrot.lane.b32.xlu0 %v526, 88
        %v1046 = vpop.permute.xlu0 %1045
        %1047 = vrot.lane.b32.xlu0 %v527, 88
        %v1048 = vpop.permute.xlu0 %1047
        %1049 = vrot.lane.b32.xlu0 %v528, 88
        %v1050 = vpop.permute.xlu0 %1049
        %1051 = vrot.lane.b32.xlu0 %v529, 88
        %v1052 = vpop.permute.xlu0 %1051
        %1053 = vrot.lane.b32.xlu0 %v530, 88
        %v1054 = vpop.permute.xlu0 %1053
        %1055 = vrot.lane.b32.xlu0 %v531, 88
        %v1056 = vpop.permute.xlu0 %1055
        %1057 = vrot.lane.b32.xlu0 %v532, 88
        %v1058 = vpop.permute.xlu0 %1057
        %1059 = vrot.lane.b32.xlu0 %v533, 88
        %v1060 = vpop.permute.xlu0 %1059
        %1061 = vrot.lane.b32.xlu0 %v534, 88
        %v1062 = vpop.permute.xlu0 %1061
        %1079 = vrot.lane.b32.xlu0 %v519, 96
        %v1080 = vpop.permute.xlu0 %1079
        %1081 = vrot.lane.b32.xlu0 %v520, 96
        %v1082 = vpop.permute.xlu0 %1081
        %1083 = vrot.lane.b32.xlu0 %v521, 96
        %v1084 = vpop.permute.xlu0 %1083
        %1085 = vrot.lane.b32.xlu0 %v522, 96
        %v1086 = vpop.permute.xlu0 %1085
        %1087 = vrot.lane.b32.xlu0 %v523, 96
        %v1088 = vpop.permute.xlu0 %1087
        %1089 = vrot.lane.b32.xlu0 %v524, 96
        %v1090 = vpop.permute.xlu0 %1089
        %1091 = vrot.lane.b32.xlu0 %v525, 96
        %v1092 = vpop.permute.xlu0 %1091
        %1093 = vrot.lane.b32.xlu0 %v526, 96
        %v1094 = vpop.permute.xlu0 %1093
        %1095 = vrot.lane.b32.xlu0 %v527, 96
        %v1096 = vpop.permute.xlu0 %1095
        %1097 = vrot.lane.b32.xlu0 %v528, 96
        %v1098 = vpop.permute.xlu0 %1097
        %1099 = vrot.lane.b32.xlu0 %v529, 96
        %v1100 = vpop.permute.xlu0 %1099
        %1101 = vrot.lane.b32.xlu0 %v530, 96
        %v1102 = vpop.permute.xlu0 %1101
        %1103 = vrot.lane.b32.xlu0 %v531, 96
        %v1104 = vpop.permute.xlu0 %1103
        %1105 = vrot.lane.b32.xlu0 %v532, 96
        %v1106 = vpop.permute.xlu0 %1105
        %1107 = vrot.lane.b32.xlu0 %v533, 96
        %v1108 = vpop.permute.xlu0 %1107
        %1109 = vrot.lane.b32.xlu0 %v534, 96
        %v1110 = vpop.permute.xlu0 %1109
        %1127 = vrot.lane.b32.xlu0 %v519, 104
        %v1128 = vpop.permute.xlu0 %1127
        %1129 = vrot.lane.b32.xlu0 %v520, 104
        %v1130 = vpop.permute.xlu0 %1129
        %1131 = vrot.lane.b32.xlu0 %v521, 104
        %v1132 = vpop.permute.xlu0 %1131
        %1133 = vrot.lane.b32.xlu0 %v522, 104
        %v1134 = vpop.permute.xlu0 %1133
        %1135 = vrot.lane.b32.xlu0 %v523, 104
        %v1136 = vpop.permute.xlu0 %1135
        %1137 = vrot.lane.b32.xlu0 %v524, 104
        %v1138 = vpop.permute.xlu0 %1137
        %1139 = vrot.lane.b32.xlu0 %v525, 104
        %v1140 = vpop.permute.xlu0 %1139
        %1141 = vrot.lane.b32.xlu0 %v526, 104
        %v1142 = vpop.permute.xlu0 %1141
        %1143 = vrot.lane.b32.xlu0 %v527, 104
        %v1144 = vpop.permute.xlu0 %1143
        %1145 = vrot.lane.b32.xlu0 %v528, 104
        %v1146 = vpop.permute.xlu0 %1145
        %1147 = vrot.lane.b32.xlu0 %v529, 104
        %v1148 = vpop.permute.xlu0 %1147
        %1149 = vrot.lane.b32.xlu0 %v530, 104
        %v1150 = vpop.permute.xlu0 %1149
        %1151 = vrot.lane.b32.xlu0 %v531, 104
        %v1152 = vpop.permute.xlu0 %1151
        %1153 = vrot.lane.b32.xlu0 %v532, 104
        %v1154 = vpop.permute.xlu0 %1153
        %1155 = vrot.lane.b32.xlu0 %v533, 104
        %v1156 = vpop.permute.xlu0 %1155
        %1157 = vrot.lane.b32.xlu0 %v534, 104
        %v1158 = vpop.permute.xlu0 %1157
        %1175 = vrot.lane.b32.xlu0 %v519, 112
        %v1176 = vpop.permute.xlu0 %1175
        %1177 = vrot.lane.b32.xlu0 %v520, 112
        %v1178 = vpop.permute.xlu0 %1177
        %1179 = vrot.lane.b32.xlu0 %v521, 112
        %v1180 = vpop.permute.xlu0 %1179
        %1181 = vrot.lane.b32.xlu0 %v522, 112
        %v1182 = vpop.permute.xlu0 %1181
        %1183 = vrot.lane.b32.xlu0 %v523, 112
        %v1184 = vpop.permute.xlu0 %1183
        %1185 = vrot.lane.b32.xlu0 %v524, 112
        %v1186 = vpop.permute.xlu0 %1185
        %1187 = vrot.lane.b32.xlu0 %v525, 112
        %v1188 = vpop.permute.xlu0 %1187
        %1189 = vrot.lane.b32.xlu0 %v526, 112
        %v1190 = vpop.permute.xlu0 %1189
        %1191 = vrot.lane.b32.xlu0 %v527, 112
        %v1192 = vpop.permute.xlu0 %1191
        %1193 = vrot.lane.b32.xlu0 %v528, 112
        %v1194 = vpop.permute.xlu0 %1193
        %1195 = vrot.lane.b32.xlu0 %v529, 112
        %v1196 = vpop.permute.xlu0 %1195
        %1197 = vrot.lane.b32.xlu0 %v530, 112
        %v1198 = vpop.permute.xlu0 %1197
        %1199 = vrot.lane.b32.xlu0 %v531, 112
        %v1200 = vpop.permute.xlu0 %1199
        %1201 = vrot.lane.b32.xlu0 %v532, 112
        %v1202 = vpop.permute.xlu0 %1201
        %1203 = vrot.lane.b32.xlu0 %v533, 112
        %v1204 = vpop.permute.xlu0 %1203
        %1205 = vrot.lane.b32.xlu0 %v534, 112
        %v1206 = vpop.permute.xlu0 %1205
        %1223 = vrot.lane.b32.xlu0 %v519, 120
        %v1224 = vpop.permute.xlu0 %1223
        %1225 = vrot.lane.b32.xlu0 %v520, 120
        %v1226 = vpop.permute.xlu0 %1225
        %1227 = vrot.lane.b32.xlu0 %v521, 120
        %v1228 = vpop.permute.xlu0 %1227
        %1229 = vrot.lane.b32.xlu0 %v522, 120
        %v1230 = vpop.permute.xlu0 %1229
        %1231 = vrot.lane.b32.xlu0 %v523, 120
        %v1232 = vpop.permute.xlu0 %1231
        %1233 = vrot.lane.b32.xlu0 %v524, 120
        %v1234 = vpop.permute.xlu0 %1233
        %1235 = vrot.lane.b32.xlu0 %v525, 120
        %v1236 = vpop.permute.xlu0 %1235
        %1237 = vrot.lane.b32.xlu0 %v526, 120
        %v1238 = vpop.permute.xlu0 %1237
        %1239 = vrot.lane.b32.xlu0 %v527, 120
        %v1240 = vpop.permute.xlu0 %1239
        %1241 = vrot.lane.b32.xlu0 %v528, 120
        %v1242 = vpop.permute.xlu0 %1241
        %1243 = vrot.lane.b32.xlu0 %v529, 120
        %v1244 = vpop.permute.xlu0 %1243
        %1245 = vrot.lane.b32.xlu0 %v530, 120
        %v1246 = vpop.permute.xlu0 %1245
        %1247 = vrot.lane.b32.xlu0 %v531, 120
        %v1248 = vpop.permute.xlu0 %1247
        %1249 = vrot.lane.b32.xlu0 %v532, 120
        %v1250 = vpop.permute.xlu0 %1249
        %1251 = vrot.lane.b32.xlu0 %v533, 120
        %v1252 = vpop.permute.xlu0 %1251
        %1253 = vrot.lane.b32.xlu0 %v534, 120
        %v1254 = vpop.permute.xlu0 %1253
        %vm1271 = vcmask 64512
        %v1272 = vsel %vm1271, %v519, %v552
        %v1273 = vsel %vm1271, %v520, %v554
        %v1274 = vsel %vm1271, %v521, %v556
        %v1275 = vsel %vm1271, %v522, %v558
        %v1276 = vsel %vm1271, %v523, %v560
        %v1277 = vsel %vm1271, %v524, %v562
        %v1278 = vsel %vm1271, %v525, %v564
        %v1279 = vsel %vm1271, %v526, %v566
        %v1280 = vsel %vm1271, %v527, %v568
        %v1281 = vsel %vm1271, %v528, %v570
        %v1282 = vsel %vm1271, %v529, %v572
        %v1283 = vsel %vm1271, %v530, %v574
        %v1284 = vsel %vm1271, %v531, %v576
        %v1285 = vsel %vm1271, %v532, %v578
        %v1286 = vsel %vm1271, %v533, %v580
        %v1287 = vsel %vm1271, %v534, %v582
        %vm1288 = vcmask 130048
        %v1289 = vsel %vm1288, %v1272, %v600
        %v1290 = vsel %vm1288, %v1273, %v602
        %v1291 = vsel %vm1288, %v1274, %v604
        %v1292 = vsel %vm1288, %v1275, %v606
        %v1293 = vsel %vm1288, %v1276, %v608
        %v1294 = vsel %vm1288, %v1277, %v610
        %v1295 = vsel %vm1288, %v1278, %v612
        %v1296 = vsel %vm1288, %v1279, %v614
        %v1297 = vsel %vm1288, %v1280, %v616
        %v1298 = vsel %vm1288, %v1281, %v618
        %v1299 = vsel %vm1288, %v1282, %v620
        %v1300 = vsel %vm1288, %v1283, %v622
        %v1301 = vsel %vm1288, %v1284, %v624
        %v1302 = vsel %vm1288, %v1285, %v626
        %v1303 = vsel %vm1288, %v1286, %v628
        %v1304 = vsel %vm1288, %v1287, %v630
        %vm1305 = vcmask 195584
        %v1306 = vsel %vm1305, %v1289, %v648
        %v1307 = vsel %vm1305, %v1290, %v650
        %v1308 = vsel %vm1305, %v1291, %v652
        %v1309 = vsel %vm1305, %v1292, %v654
        %v1310 = vsel %vm1305, %v1293, %v656
        %v1311 = vsel %vm1305, %v1294, %v658
        %v1312 = vsel %vm1305, %v1295, %v660
        %v1313 = vsel %vm1305, %v1296, %v662
        %v1314 = vsel %vm1305, %v1297, %v664
        %v1315 = vsel %vm1305, %v1298, %v666
        %v1316 = vsel %vm1305, %v1299, %v668
        %v1317 = vsel %vm1305, %v1300, %v670
        %v1318 = vsel %vm1305, %v1301, %v672
        %v1319 = vsel %vm1305, %v1302, %v674
        %v1320 = vsel %vm1305, %v1303, %v676
        %v1321 = vsel %vm1305, %v1304, %v678
        %vm1322 = vcmask 261120
        %v1323 = vsel %vm1322, %v1306, %v696
        %v1324 = vsel %vm1322, %v1307, %v698
        %v1325 = vsel %vm1322, %v1308, %v700
        %v1326 = vsel %vm1322, %v1309, %v702
        %v1327 = vsel %vm1322, %v1310, %v704
        %v1328 = vsel %vm1322, %v1311, %v706
        %v1329 = vsel %vm1322, %v1312, %v708
        %v1330 = vsel %vm1322, %v1313, %v710
        %v1331 = vsel %vm1322, %v1314, %v712
        %v1332 = vsel %vm1322, %v1315, %v714
        %v1333 = vsel %vm1322, %v1316, %v716
        %v1334 = vsel %vm1322, %v1317, %v718
        %v1335 = vsel %vm1322, %v1318, %v720
        %v1336 = vsel %vm1322, %v1319, %v722
        %v1337 = vsel %vm1322, %v1320, %v724
        %v1338 = vsel %vm1322, %v1321, %v726
        %vm1339 = vcmask 326656
        %v1340 = vsel %vm1339, %v1323, %v744
        %v1341 = vsel %vm1339, %v1324, %v746
        %v1342 = vsel %vm1339, %v1325, %v748
        %v1343 = vsel %vm1339, %v1326, %v750
        %v1344 = vsel %vm1339, %v1327, %v752
        %v1345 = vsel %vm1339, %v1328, %v754
        %v1346 = vsel %vm1339, %v1329, %v756
        %v1347 = vsel %vm1339, %v1330, %v758
        %v1348 = vsel %vm1339, %v1331, %v760
        %v1349 = vsel %vm1339, %v1332, %v762
        %v1350 = vsel %vm1339, %v1333, %v764
        %v1351 = vsel %vm1339, %v1334, %v766
        %v1352 = vsel %vm1339, %v1335, %v768
        %v1353 = vsel %vm1339, %v1336, %v770
        %v1354 = vsel %vm1339, %v1337, %v772
        %v1355 = vsel %vm1339, %v1338, %v774
        %vm1356 = vcmask 392192
        %v1357 = vsel %vm1356, %v1340, %v792
        %v1358 = vsel %vm1356, %v1341, %v794
        %v1359 = vsel %vm1356, %v1342, %v796
        %v1360 = vsel %vm1356, %v1343, %v798
        %v1361 = vsel %vm1356, %v1344, %v800
        %v1362 = vsel %vm1356, %v1345, %v802
        %v1363 = vsel %vm1356, %v1346, %v804
        %v1364 = vsel %vm1356, %v1347, %v806
        %v1365 = vsel %vm1356, %v1348, %v808
        %v1366 = vsel %vm1356, %v1349, %v810
        %v1367 = vsel %vm1356, %v1350, %v812
        %v1368 = vsel %vm1356, %v1351, %v814
        %v1369 = vsel %vm1356, %v1352, %v816
        %v1370 = vsel %vm1356, %v1353, %v818
        %v1371 = vsel %vm1356, %v1354, %v820
        %v1372 = vsel %vm1356, %v1355, %v822
        %vm1373 = vcmask 457728
        %v1374 = vsel %vm1373, %v1357, %v840
        %v1375 = vsel %vm1373, %v1358, %v842
        %v1376 = vsel %vm1373, %v1359, %v844
        %v1377 = vsel %vm1373, %v1360, %v846
        %v1378 = vsel %vm1373, %v1361, %v848
        %v1379 = vsel %vm1373, %v1362, %v850
        %v1380 = vsel %vm1373, %v1363, %v852
        %v1381 = vsel %vm1373, %v1364, %v854
        %v1382 = vsel %vm1373, %v1365, %v856
        %v1383 = vsel %vm1373, %v1366, %v858
        %v1384 = vsel %vm1373, %v1367, %v860
        %v1385 = vsel %vm1373, %v1368, %v862
        %v1386 = vsel %vm1373, %v1369, %v864
        %v1387 = vsel %vm1373, %v1370, %v866
        %v1388 = vsel %vm1373, %v1371, %v868
        %v1389 = vsel %vm1373, %v1372, %v870
        %vm1390 = vcmask 523264
        %v1391 = vsel %vm1390, %v1374, %v888
        %v1392 = vsel %vm1390, %v1375, %v890
        %v1393 = vsel %vm1390, %v1376, %v892
        %v1394 = vsel %vm1390, %v1377, %v894
        %v1395 = vsel %vm1390, %v1378, %v896
        %v1396 = vsel %vm1390, %v1379, %v898
        %v1397 = vsel %vm1390, %v1380, %v900
        %v1398 = vsel %vm1390, %v1381, %v902
        %v1399 = vsel %vm1390, %v1382, %v904
        %v1400 = vsel %vm1390, %v1383, %v906
        %v1401 = vsel %vm1390, %v1384, %v908
        %v1402 = vsel %vm1390, %v1385, %v910
        %v1403 = vsel %vm1390, %v1386, %v912
        %v1404 = vsel %vm1390, %v1387, %v914
        %v1405 = vsel %vm1390, %v1388, %v916
        %v1406 = vsel %vm1390, %v1389, %v918
        %vm1407 = vcmask 588800
        %v1408 = vsel %vm1407, %v1391, %v936
        %v1409 = vsel %vm1407, %v1392, %v938
        %v1410 = vsel %vm1407, %v1393, %v940
        %v1411 = vsel %vm1407, %v1394, %v942
        %v1412 = vsel %vm1407, %v1395, %v944
        %v1413 = vsel %vm1407, %v1396, %v946
        %v1414 = vsel %vm1407, %v1397, %v948
        %v1415 = vsel %vm1407, %v1398, %v950
        %v1416 = vsel %vm1407, %v1399, %v952
        %v1417 = vsel %vm1407, %v1400, %v954
        %v1418 = vsel %vm1407, %v1401, %v956
        %v1419 = vsel %vm1407, %v1402, %v958
        %v1420 = vsel %vm1407, %v1403, %v960
        %v1421 = vsel %vm1407, %v1404, %v962
        %v1422 = vsel %vm1407, %v1405, %v964
        %v1423 = vsel %vm1407, %v1406, %v966
        %vm1424 = vcmask 654336
        %v1425 = vsel %vm1424, %v1408, %v984
        %v1426 = vsel %vm1424, %v1409, %v986
        %v1427 = vsel %vm1424, %v1410, %v988
        %v1428 = vsel %vm1424, %v1411, %v990
        %v1429 = vsel %vm1424, %v1412, %v992
        %v1430 = vsel %vm1424, %v1413, %v994
        %v1431 = vsel %vm1424, %v1414, %v996
        %v1432 = vsel %vm1424, %v1415, %v998
        %v1433 = vsel %vm1424, %v1416, %v1000
        %v1434 = vsel %vm1424, %v1417, %v1002
        %v1435 = vsel %vm1424, %v1418, %v1004
        %v1436 = vsel %vm1424, %v1419, %v1006
        %v1437 = vsel %vm1424, %v1420, %v1008
        %v1438 = vsel %vm1424, %v1421, %v1010
        %v1439 = vsel %vm1424, %v1422, %v1012
        %v1440 = vsel %vm1424, %v1423, %v1014
        %vm1441 = vcmask 719872
        %v1442 = vsel %vm1441, %v1425, %v1032
        %v1443 = vsel %vm1441, %v1426, %v1034
        %v1444 = vsel %vm1441, %v1427, %v1036
        %v1445 = vsel %vm1441, %v1428, %v1038
        %v1446 = vsel %vm1441, %v1429, %v1040
        %v1447 = vsel %vm1441, %v1430, %v1042
        %v1448 = vsel %vm1441, %v1431, %v1044
        %v1449 = vsel %vm1441, %v1432, %v1046
        %v1450 = vsel %vm1441, %v1433, %v1048
        %v1451 = vsel %vm1441, %v1434, %v1050
        %v1452 = vsel %vm1441, %v1435, %v1052
        %v1453 = vsel %vm1441, %v1436, %v1054
        %v1454 = vsel %vm1441, %v1437, %v1056
        %v1455 = vsel %vm1441, %v1438, %v1058
        %v1456 = vsel %vm1441, %v1439, %v1060
        %v1457 = vsel %vm1441, %v1440, %v1062
        %vm1458 = vcmask 785408
        %v1459 = vsel %vm1458, %v1442, %v1080
        %v1460 = vsel %vm1458, %v1443, %v1082
        %v1461 = vsel %vm1458, %v1444, %v1084
        %v1462 = vsel %vm1458, %v1445, %v1086
        %v1463 = vsel %vm1458, %v1446, %v1088
        %v1464 = vsel %vm1458, %v1447, %v1090
        %v1465 = vsel %vm1458, %v1448, %v1092
        %v1466 = vsel %vm1458, %v1449, %v1094
        %v1467 = vsel %vm1458, %v1450, %v1096
        %v1468 = vsel %vm1458, %v1451, %v1098
        %v1469 = vsel %vm1458, %v1452, %v1100
        %v1470 = vsel %vm1458, %v1453, %v1102
        %v1471 = vsel %vm1458, %v1454, %v1104
        %v1472 = vsel %vm1458, %v1455, %v1106
        %v1473 = vsel %vm1458, %v1456, %v1108
        %v1474 = vsel %vm1458, %v1457, %v1110
        %vm1475 = vcmask 850944
        %v1476 = vsel %vm1475, %v1459, %v1128
        %v1477 = vsel %vm1475, %v1460, %v1130
        %v1478 = vsel %vm1475, %v1461, %v1132
        %v1479 = vsel %vm1475, %v1462, %v1134
        %v1480 = vsel %vm1475, %v1463, %v1136
        %v1481 = vsel %vm1475, %v1464, %v1138
        %v1482 = vsel %vm1475, %v1465, %v1140
        %v1483 = vsel %vm1475, %v1466, %v1142
        %v1484 = vsel %vm1475, %v1467, %v1144
        %v1485 = vsel %vm1475, %v1468, %v1146
        %v1486 = vsel %vm1475, %v1469, %v1148
        %v1487 = vsel %vm1475, %v1470, %v1150
        %v1488 = vsel %vm1475, %v1471, %v1152
        %v1489 = vsel %vm1475, %v1472, %v1154
        %v1490 = vsel %vm1475, %v1473, %v1156
        %v1491 = vsel %vm1475, %v1474, %v1158
        %vm1492 = vcmask 916480
        %v1493 = vsel %vm1492, %v1476, %v1176
        %v1494 = vsel %vm1492, %v1477, %v1178
        %v1495 = vsel %vm1492, %v1478, %v1180
        %v1496 = vsel %vm1492, %v1479, %v1182
        %v1497 = vsel %vm1492, %v1480, %v1184
        %v1498 = vsel %vm1492, %v1481, %v1186
        %v1499 = vsel %vm1492, %v1482, %v1188
        %v1500 = vsel %vm1492, %v1483, %v1190
        %v1501 = vsel %vm1492, %v1484, %v1192
        %v1502 = vsel %vm1492, %v1485, %v1194
        %v1503 = vsel %vm1492, %v1486, %v1196
        %v1504 = vsel %vm1492, %v1487, %v1198
        %v1505 = vsel %vm1492, %v1488, %v1200
        %v1506 = vsel %vm1492, %v1489, %v1202
        %v1507 = vsel %vm1492, %v1490, %v1204
        %v1508 = vsel %vm1492, %v1491, %v1206
        %vm1509 = vcmask 982016
        %v1510 = vsel %vm1509, %v1493, %v1224
        %v1511 = vsel %vm1509, %v1494, %v1226
        %v1512 = vsel %vm1509, %v1495, %v1228
        %v1513 = vsel %vm1509, %v1496, %v1230
        %v1514 = vsel %vm1509, %v1497, %v1232
        %v1515 = vsel %vm1509, %v1498, %v1234
        %v1516 = vsel %vm1509, %v1499, %v1236
        %v1517 = vsel %vm1509, %v1500, %v1238
        %v1518 = vsel %vm1509, %v1501, %v1240
        %v1519 = vsel %vm1509, %v1502, %v1242
        %v1520 = vsel %vm1509, %v1503, %v1244
        %v1521 = vsel %vm1509, %v1504, %v1246
        %v1522 = vsel %vm1509, %v1505, %v1248
        %v1523 = vsel %vm1509, %v1506, %v1250
        %v1524 = vsel %vm1509, %v1507, %v1252
        %v1525 = vsel %vm1509, %v1508, %v1254
        %v1526 = vld [vmem:[%s7] sm:$0xff]
        %v1527 = vld [vmem:[%s7 + $0x8] sm:$0xff]
        %v1528 = vld [vmem:[%s7 + $0x10] sm:$0xff]
        %v1529 = vld [vmem:[%s7 + $0x18] sm:$0xff]
        %v1530 = vld [vmem:[%s7 + $0x20] sm:$0xff]
        %v1531 = vld [vmem:[%s7 + $0x28] sm:$0xff]
        %v1532 = vld [vmem:[%s7 + $0x30] sm:$0xff]
        %v1533 = vld [vmem:[%s7 + $0x38] sm:$0xff]
        %v1534 = vld [vmem:[%s7 + $0x40] sm:$0xff]
        %v1535 = vld [vmem:[%s7 + $0x48] sm:$0xff]
        %v1536 = vld [vmem:[%s7 + $0x50] sm:$0xff]
        %v1537 = vld [vmem:[%s7 + $0x58] sm:$0xff]
        %v1538 = vld [vmem:[%s7 + $0x60] sm:$0xff]
        %v1539 = vld [vmem:[%s7 + $0x68] sm:$0xff]
        %v1540 = vld [vmem:[%s7 + $0x70] sm:$0xff]
        %v1541 = vld [vmem:[%s7 + $0x78] sm:$0xff]
        %v1542 = vmul.f32 %v1510, %v1526
        %v1543 = vmul.f32 %v1511, %v1527
        %v1544 = vmul.f32 %v1512, %v1528
        %v1545 = vmul.f32 %v1513, %v1529
        %v1546 = vmul.f32 %v1514, %v1530
        %v1547 = vmul.f32 %v1515, %v1531
        %v1548 = vmul.f32 %v1516, %v1532
        %v1549 = vmul.f32 %v1517, %v1533
        %v1550 = vmul.f32 %v1518, %v1534
        %v1551 = vmul.f32 %v1519, %v1535
        %v1552 = vmul.f32 %v1520, %v1536
        %v1553 = vmul.f32 %v1521, %v1537
        %v1554 = vmul.f32 %v1522, %v1538
        %v1555 = vmul.f32 %v1523, %v1539
        %v1556 = vmul.f32 %v1524, %v1540
        %v1557 = vmul.f32 %v1525, %v1541
        %1558 = vmatpush.msra.mxu0 %v1557
        %1559 = vmatpush.msra.mxu0 %v1556
        %1560 = vmatpush.msra.mxu0 %v1555
        %1561 = vmatpush.msra.mxu0 %v1554
        %1562 = vmatpush.msra.mxu0 %v1553
        %1563 = vmatpush.msra.mxu0 %v1552
        %1564 = vmatpush.msra.mxu0 %v1551
        %1565 = vmatpush.msra.mxu0 %v1550
        %1566 = vmatpush.msra.mxu0 %v1549
        %1567 = vmatpush.msra.mxu0 %v1548
        %1568 = vmatpush.msra.mxu0 %v1547
        %1569 = vmatpush.msra.mxu0 %v1546
        %1570 = vmatpush.msra.mxu0 %v1545
        %1571 = vmatpush.msra.mxu0 %v1544
        %1572 = vmatpush.msra.mxu0 %v1543
        %1573 = vmatpush.msra.mxu0 %v1542
        %1574 = vmatmul.f32.gmra.mxu0 %v344
        %v1575 = vpop.f32.mrf.mxu0
        %v1576 = vadd.f32 0.0, %v1575
        %1577 = vmatmul.f32.gmra.mxu0 %v347
        %v1578 = vpop.f32.mrf.mxu0
        %v1579 = vadd.f32 0.0, %v1578
        %1580 = vdwg.mxu0
        %1581 = vst [vmem:[%s298] sm:$0xff] %v1576
        %1582 = vst [vmem:[%s298 + $0x8] sm:$0xff] %v1579
        %s1583 = sand.u32 %s203, 1
        %s1584 = scalar_lea.sflag [#allocation3], %s1583
        %s1585 = sand.u32 %s203, 1
        %s1586 = smul.addr %s1585, 16
        %s1587 = scalar_lea.vmem [#allocation2], %s1586
        // Predicated region
        $region53: #{tpu_custom_call.1} parent=51 // pred_check
          %p1588 = pneg %p213
        $region54: #{tpu_custom_call.1} parent=51 // pred_check_branch
          %1590 = sbr.rel (%p1588) target = $region56
        $region55: #{tpu_custom_call.1} parent=51 // pred_region
          %1592 = vsyncadd %s1584, 0
          %s1593 = smul.addr %s22, 2
          %s1594 = smul.addr %s1593, 8
          %s1595 = scalar_lea.hbm %s8, %s1594
          %s1596 = sshll.u32 %s1587, 4
          %s1597 = int_to_ptr.vmem [resolvable:$true] %s1596
          %s1598 = sshll.u32 %s1595, 4
          %s1599 = int_to_ptr.hbm [resolvable:$true] %s1598
          %1604 = dma.vmem_to_hbm [thread:$0]  %s1597, 256, %s1599, %s1584, 128, 128, 8
        $region56: #{tpu_custom_call.1} parent=51 // pred_fallthru
          _
      $region52: #{tpu_custom_call.1} parent=5 // pred_fallthru
        _
      %p1605 = scmp.le.s32.totalorder 2, %s17
      // Predicated region
      $region57: #{tpu_custom_call.1} parent=5 // pred_check
        %p1606 = pneg %p1605
      $region58: #{tpu_custom_call.1} parent=5 // pred_check_branch
        %1608 = sbr.rel (%p1606) target = $region60
      $region59: #{tpu_custom_call.1} parent=5 // pred_region
        %s1609 = ssub.s32 %s17, 2
        // Predicated region
        $region61: #{tpu_custom_call.1} parent=59 // pred_check
          %p1610 = pneg %p219
        $region62: #{tpu_custom_call.1} parent=59 // pred_check_branch
          %1612 = sbr.rel (%p1610) target = $region64
        $region63: #{tpu_custom_call.1} parent=59 // pred_region
          %s1613 = sand.u32 %s204, 1
          %s1614 = scalar_lea.sflag [#allocation3], %s1613
          %s1615 = sand.u32 %s204, 1
          %s1616 = smul.addr %s1615, 16
          %s1617 = scalar_lea.vmem [#allocation2], %s1616
          %1619 = dma.done %s1614, 256
        $region64: #{tpu_custom_call.1} parent=59 // pred_fallthru
          _
      $region60: #{tpu_custom_call.1} parent=5 // pred_fallthru
        _
    $region6: #{tpu_custom_call.1} parent=1 // loop_footer
      %s21 = sadd.s32 1, %s17
    $region7: #{tpu_custom_call.1} parent=1 // loop_footer_branch
      %16 = sbr.rel target = $region3
    $region8: #{tpu_custom_call.1} parent=1 // loop_exit
      _
    %1620 = vsyncpa [#allocation3], 1
    %s1621 = scalar_lea.sflag [#allocation3], 1
    %1622 = vsyncpa %s1621, 1

</llo_original>
